<compile_context>
chip_gen: v7x
topology: tpu7x:2x2x1
jax: 0.10.0
libtpu: 0.0.40
codegen_flags: <defaults>
</compile_context>

<pallas_src>
import functools

import jax
import jax.numpy as jnp
from jax.experimental import pallas as pl
from jax.experimental.pallas import tpu as pltpu


def _newton_recip(d):
    # EUP approx reciprocal + one Newton-Raphson refinement: moves the divide off
    # the vector-ALU slot while keeping ~f32 accuracy (denominators are >= eps > 0).
    r0 = pl.reciprocal(d, approx=True)
    return r0 * (2.0 - d * r0)


def _lowrank_st_nmf_kernel(x_ref, wt_ref, o_ref, *, c_in, c_out, n_taps, ranks,
                           stage_num, center, eps):
    """Fused NMF stages + centre tap + tail 1x1x1 conv + relu for one position tile.

    x_ref : (c_out, n_taps, TM) f32 VMEM  im2col'd relu(head(x)); positions in lanes
    wt_ref: (c_in, c_out)       f32 SMEM  tail 1x1x1 conv weight (scalar reads)
    o_ref : (c_in, TM)          f32 VMEM  NCDHW-major output tile
    """
    r = float(ranks)

    # --- NMF init: u_c = mean over taps, v_k = mean over channels (one replica) ---
    u = [jnp.sum(x_ref[c], axis=0, keepdims=True) * (1.0 / n_taps)
         for c in range(c_out)]                                     # (1, TM) each
    v = x_ref[0]
    for c in range(1, c_out):
        v = v + x_ref[c]
    v = v * (1.0 / c_out)                                           # (n_taps, TM)

    for _ in range(stage_num):
        # V update:  v <- v * (u . X) / (R * (sum_c u_c^2) * v + eps)
        t = u[0] * x_ref[0]                                         # (n_taps, TM)
        s = u[0] * u[0]                                             # (1, TM)
        for c in range(1, c_out):
            t = t + u[c] * x_ref[c]
            s = s + u[c] * u[c]
        v = v * t * _newton_recip(r * s * v + eps)
        # U update:  u_c <- u_c * (X_c . v) / (R * u_c * (sum_k v_k^2) + eps)
        rq = r * jnp.sum(v * v, axis=0, keepdims=True)              # (1, TM)
        u = [u[c] * jnp.sum(x_ref[c] * v, axis=0, keepdims=True)
             * _newton_recip(u[c] * rq + eps) for c in range(c_out)]

    # Centre tap of UV = R * u_c * v[centre]; tail 1x1x1 conv + relu.
    # Direct per-row stores (no concatenate -> no sublane-packing shuffle).
    v_ctr = v[center:center + 1, :]                                 # (1, TM)
    uvc = [u[c] * v_ctr for c in range(c_out)]                      # (1, TM) each
    for ci in range(c_in):
        acc = wt_ref[ci, 0] * uvc[0]
        for co in range(1, c_out):
            acc = acc + wt_ref[ci, co] * uvc[co]
        o_ref[ci:ci + 1, :] = jnp.maximum(r * acc, 0.0).astype(o_ref.dtype)


def lowrank_st_layer(x, w_head, w_tail, *, kernel_size, duration_kernel_size,
                     stride=1, dilation=1, padding=0, duration_padding=0,
                     ranks=3, stage_num=3, eps=1e-6, tile_m=None):
    """Forward pass of LowRankSTLayer_dilation.

    x       : (B, Cin, D, H, W)  NCDHW, like the PyTorch module.
    w_head  : (Cin, Cout)  == head_conv.weight[:, :, 0, 0, 0].T
    w_tail  : (Cin, Cout)  == tail_conv.weight[:, :, 0, 0, 0]
    returns : (B, Cin, D, H, W)
    """
    B, Cin, D, H, W = x.shape
    Cout = w_head.shape[1]
    k, kt, dil, s = kernel_size, duration_kernel_size, dilation, stride
    p, dp = padding, duration_padding

    # The module's .view(...) after the unfolds is only valid when the unfolds
    # preserve the spatial / temporal extents (how the layer is actually used).
    Dp, Hp, Wp = D + 2 * dp, H + 2 * p, W + 2 * p
    assert (Hp - dil * (k - 1) - 1) // s + 1 == H, "spatial unfold must preserve H"
    assert (Wp - dil * (k - 1) - 1) // s + 1 == W, "spatial unfold must preserve W"
    assert (Dp - kt) // s + 1 == D, "temporal unfold must preserve D"

    K = k * k * kt
    DHW = D * H * W
    if tile_m is None:
        # Prefer 256: keeps the live vreg set comfortably under the 64-vreg file.
        for t in (256, 512, 384, 128):
            if DHW % t == 0:
                tile_m = t
                break
    # TODO(synk): masked last-tile stores for DHW not a multiple of 128.
    assert tile_m is not None and DHW % tile_m == 0 and tile_m % 128 == 0

    # head 1x1x1 conv + relu, then replicate pad (PyTorch 'replicate' == jnp 'edge').
    h = jax.nn.relu(jnp.einsum('bidhw,io->bodhw', x, w_head,
                               precision=jax.lax.Precision.HIGHEST))
    hp = jnp.pad(h, ((0, 0), (0, 0), (dp, dp), (p, p), (p, p)), mode='edge')

    # Space-time im2col -> (B, Cout, K, D*H*W): positions lane-dense and already
    # NCDHW-major, so the kernel writes the final layout (no transpose, no pad).
    # Tap ordering matches the module: tap = (ky*k + kx)*kt + tk.
    taps = []
    for ky in range(k):
        for kx in range(k):
            for tk in range(kt):
                sl = hp[:, :, tk:tk + s * D:s,
                        ky * dil:ky * dil + s * H:s,
                        kx * dil:kx * dil + s * W:s]                # (B,Cout,D,H,W)
                taps.append(sl.reshape(B, Cout, DHW))
    X = jnp.stack(taps, axis=2).astype(jnp.float32)                 # (B,Cout,K,DHW)

    center = (k // 2 * k + k // 2) * kt + kt // 2
    kern = functools.partial(_lowrank_st_nmf_kernel, c_in=Cin, c_out=Cout,
                             n_taps=K, ranks=ranks, stage_num=stage_num,
                             center=center, eps=eps)

    out = pl.pallas_call(
        kern,
        out_shape=jax.ShapeDtypeStruct((B, Cin, DHW), jnp.float32),
        grid_spec=pltpu.PrefetchScalarGridSpec(
            num_scalar_prefetch=0,
            grid=(B, DHW // tile_m),
            in_specs=[
                pl.BlockSpec((None, Cout, K, tile_m),
                             lambda b, i: (b, 0, 0, i)),             # X
                pl.BlockSpec(memory_space=pltpu.MemorySpace.SMEM),   # w_tail
            ],
            out_specs=pl.BlockSpec((None, Cin, tile_m), lambda b, i: (b, 0, i)),
        ),
        compiler_params=pltpu.CompilerParams(
            dimension_semantics=("parallel", "parallel")),
    )(X, w_tail.astype(jnp.float32))

    return out.reshape(B, Cin, D, H, W)


def lowrank_st_layer_ref(x, w_head, w_tail, *, kernel_size, duration_kernel_size,
                         stride=1, dilation=1, padding=0, duration_padding=0,
                         ranks=3, stage_num=3, eps=1e-6):
    """Pure-JAX mirror of the PyTorch forward (full rank replicas; for checking)."""
    P = jax.lax.Precision.HIGHEST
    B, Cin, D, H, W = x.shape
    k, kt, dil, s = kernel_size, duration_kernel_size, dilation, stride
    p, dp = padding, duration_padding
    h = jax.nn.relu(jnp.einsum('bidhw,io->bodhw', x, w_head, precision=P))
    hp = jnp.pad(h, ((0, 0), (0, 0), (dp, dp), (p, p), (p, p)), mode='edge')
    taps = []
    for ky in range(k):
        for kx in range(k):
            for tk in range(kt):
                taps.append(hp[:, :, tk:tk + s * D:s,
                               ky * dil:ky * dil + s * H:s,
                               kx * dil:kx * dil + s * W:s])
    X = jnp.stack(taps, axis=-1)                                    # (B,C,D,H,W,K)
    U = jnp.repeat(jnp.mean(X, axis=-1, keepdims=True), ranks, axis=-1)
    V = jnp.repeat(jnp.mean(X, axis=1, keepdims=True), ranks, axis=1)
    for _ in range(stage_num):
        num = jnp.einsum('bcdhwr,bcdhwk->brdhwk', U, X, precision=P)
        den = jnp.einsum('bcdhwr,bcdhwk->brdhwk', U,
                         jnp.einsum('bcdhwr,brdhwk->bcdhwk', U, V, precision=P),
                         precision=P)
        V = V * num / (den + eps)
        num = jnp.einsum('bcdhwk,brdhwk->bcdhwr', X, V, precision=P)
        den = jnp.einsum('bcdhwk,brdhwk->bcdhwr',
                         jnp.einsum('bcdhwr,brdhwk->bcdhwk', U, V, precision=P),
                         V, precision=P)
        U = U * num / (den + eps)
    UV = jnp.einsum('bcdhwr,brdhwk->bcdhwk', U, V, precision=P)
    center = (k // 2 * k + k // 2) * kt + kt // 2
    UVc = UV[..., center]                                           # (B,C,D,H,W)
    return jax.nn.relu(jnp.einsum('bodhw,io->bidhw', UVc, w_tail, precision=P))


if __name__ == "__main__":
    B, Cin, Cout = 2, 4, 4
    D, H, W = 8, 16, 16
    kernel_size, duration_kernel_size = 3, 3
    dilation, padding = 2, 2            # "same" spatial unfold with dilation 2
    stride = 1
    duration_padding = 1                # "same" temporal unfold
    ranks, stage_num = 3, 3

    key = jax.random.PRNGKey(0)
    k_x, k_h, k_t = jax.random.split(key, 3)
    x = jax.random.normal(k_x, (B, Cin, D, H, W), jnp.float32)
    # 1x1x1 conv weights (bias=False), stored squeezed as documented in the wrapper.
    w_head = 0.5 * jax.random.normal(k_h, (Cin, Cout), jnp.float32)
    w_tail = 0.5 * jax.random.normal(k_t, (Cin, Cout), jnp.float32)

    kwargs = dict(kernel_size=kernel_size, duration_kernel_size=duration_kernel_size,
                  stride=stride, dilation=dilation, padding=padding,
                  duration_padding=duration_padding, ranks=ranks, stage_num=stage_num)

    out = jax.block_until_ready(lowrank_st_layer(x, w_head, w_tail, **kwargs))
    ref = jax.block_until_ready(lowrank_st_layer_ref(x, w_head, w_tail, **kwargs))

    assert out.shape == (B, Cin, D, H, W)
    max_err = float(jnp.max(jnp.abs(out - ref)))
    # Tolerance leaves a small margin for the Newton-refined EUP reciprocal
    # (expected error << 1e-4 after one refinement step).
    assert jnp.allclose(out, ref, atol=2e-4, rtol=2e-4), f"max abs err {max_err}"
    print("KERNEL_OK")
</pallas_src>

<mosaic_0001>
module attributes {stable_mosaic.version = 11 : i64} {
  func.func @_lowrank_st_nmf_kernel(%arg0: i32, %arg1: i32, %arg2: memref<1x4x27x256xf32, #tpu.memory_space<vmem>>, %arg3: memref<4x4xf32, #tpu.memory_space<smem>>, %arg4: memref<1x4x256xf32, #tpu.memory_space<vmem>>) attributes {dimension_semantics = [#tpu.dimension_semantics<parallel>, #tpu.dimension_semantics<parallel>], iteration_bounds = array<i64: 2, 8>, scalar_prefetch = 0 : i64, scratch_operands = 0 : i64, tpu.core_type = #tpu.core_type<tc>, window_params = [{transform_indices = @transform_0, window_bounds = array<i64: 1, 4, 27, 256>}, {transform_indices = @transform_1, window_bounds = array<i64: 4, 4>}, {transform_indices = @transform_2, window_bounds = array<i64: 1, 4, 256>}]} {
    %c0 = arith.constant 0 : index
    %c0_0 = arith.constant 0 : index
    %c0_1 = arith.constant 0 : index
    %c0_2 = arith.constant 0 : index
    %0 = vector.load %arg2[%c0, %c0_0, %c0_1, %c0_2] : memref<1x4x27x256xf32, #tpu.memory_space<vmem>>, vector<1x1x27x256xf32>
    %1 = vector.shape_cast %0 : vector<1x1x27x256xf32> to vector<27x256xf32>
    %cst = arith.constant dense<0.000000e+00> : vector<256xf32>
    %2 = vector.multi_reduction <add>, %1, %cst [0] : vector<27x256xf32> to vector<256xf32>
    %3 = vector.shape_cast %2 : vector<256xf32> to vector<1x256xf32>
    %cst_3 = arith.constant 0.0370370373 : f32
    %4 = vector.broadcast %cst_3 : f32 to vector<1x256xf32>
    %5 = arith.mulf %3, %4 : vector<1x256xf32>
    %c0_4 = arith.constant 0 : index
    %c1 = arith.constant 1 : index
    %c0_5 = arith.constant 0 : index
    %c0_6 = arith.constant 0 : index
    %6 = vector.load %arg2[%c0_4, %c1, %c0_5, %c0_6] : memref<1x4x27x256xf32, #tpu.memory_space<vmem>>, vector<1x1x27x256xf32>
    %7 = vector.shape_cast %6 : vector<1x1x27x256xf32> to vector<27x256xf32>
    %cst_7 = arith.constant dense<0.000000e+00> : vector<256xf32>
    %8 = vector.multi_reduction <add>, %7, %cst_7 [0] : vector<27x256xf32> to vector<256xf32>
    %9 = vector.shape_cast %8 : vector<256xf32> to vector<1x256xf32>
    %cst_8 = arith.constant 0.0370370373 : f32
    %10 = vector.broadcast %cst_8 : f32 to vector<1x256xf32>
    %11 = arith.mulf %9, %10 : vector<1x256xf32>
    %c0_9 = arith.constant 0 : index
    %c2 = arith.constant 2 : index
    %c0_10 = arith.constant 0 : index
    %c0_11 = arith.constant 0 : index
    %12 = vector.load %arg2[%c0_9, %c2, %c0_10, %c0_11] : memref<1x4x27x256xf32, #tpu.memory_space<vmem>>, vector<1x1x27x256xf32>
    %13 = vector.shape_cast %12 : vector<1x1x27x256xf32> to vector<27x256xf32>
    %cst_12 = arith.constant dense<0.000000e+00> : vector<256xf32>
    %14 = vector.multi_reduction <add>, %13, %cst_12 [0] : vector<27x256xf32> to vector<256xf32>
    %15 = vector.shape_cast %14 : vector<256xf32> to vector<1x256xf32>
    %cst_13 = arith.constant 0.0370370373 : f32
    %16 = vector.broadcast %cst_13 : f32 to vector<1x256xf32>
    %17 = arith.mulf %15, %16 : vector<1x256xf32>
    %c0_14 = arith.constant 0 : index
    %c3 = arith.constant 3 : index
    %c0_15 = arith.constant 0 : index
    %c0_16 = arith.constant 0 : index
    %18 = vector.load %arg2[%c0_14, %c3, %c0_15, %c0_16] : memref<1x4x27x256xf32, #tpu.memory_space<vmem>>, vector<1x1x27x256xf32>
    %19 = vector.shape_cast %18 : vector<1x1x27x256xf32> to vector<27x256xf32>
    %cst_17 = arith.constant dense<0.000000e+00> : vector<256xf32>
    %20 = vector.multi_reduction <add>, %19, %cst_17 [0] : vector<27x256xf32> to vector<256xf32>
    %21 = vector.shape_cast %20 : vector<256xf32> to vector<1x256xf32>
    %cst_18 = arith.constant 0.0370370373 : f32
    %22 = vector.broadcast %cst_18 : f32 to vector<1x256xf32>
    %23 = arith.mulf %21, %22 : vector<1x256xf32>
    %c0_19 = arith.constant 0 : index
    %c0_20 = arith.constant 0 : index
    %c0_21 = arith.constant 0 : index
    %c0_22 = arith.constant 0 : index
    %24 = vector.load %arg2[%c0_19, %c0_20, %c0_21, %c0_22] : memref<1x4x27x256xf32, #tpu.memory_space<vmem>>, vector<1x1x27x256xf32>
    %25 = vector.shape_cast %24 : vector<1x1x27x256xf32> to vector<27x256xf32>
    %c0_23 = arith.constant 0 : index
    %c1_24 = arith.constant 1 : index
    %c0_25 = arith.constant 0 : index
    %c0_26 = arith.constant 0 : index
    %26 = vector.load %arg2[%c0_23, %c1_24, %c0_25, %c0_26] : memref<1x4x27x256xf32, #tpu.memory_space<vmem>>, vector<1x1x27x256xf32>
    %27 = vector.shape_cast %26 : vector<1x1x27x256xf32> to vector<27x256xf32>
    %28 = arith.addf %25, %27 : vector<27x256xf32>
    %c0_27 = arith.constant 0 : index
    %c2_28 = arith.constant 2 : index
    %c0_29 = arith.constant 0 : index
    %c0_30 = arith.constant 0 : index
    %29 = vector.load %arg2[%c0_27, %c2_28, %c0_29, %c0_30] : memref<1x4x27x256xf32, #tpu.memory_space<vmem>>, vector<1x1x27x256xf32>
    %30 = vector.shape_cast %29 : vector<1x1x27x256xf32> to vector<27x256xf32>
    %31 = arith.addf %28, %30 : vector<27x256xf32>
    %c0_31 = arith.constant 0 : index
    %c3_32 = arith.constant 3 : index
    %c0_33 = arith.constant 0 : index
    %c0_34 = arith.constant 0 : index
    %32 = vector.load %arg2[%c0_31, %c3_32, %c0_33, %c0_34] : memref<1x4x27x256xf32, #tpu.memory_space<vmem>>, vector<1x1x27x256xf32>
    %33 = vector.shape_cast %32 : vector<1x1x27x256xf32> to vector<27x256xf32>
    %34 = arith.addf %31, %33 : vector<27x256xf32>
    %cst_35 = arith.constant 2.500000e-01 : f32
    %35 = vector.broadcast %cst_35 : f32 to vector<27x256xf32>
    %36 = arith.mulf %34, %35 : vector<27x256xf32>
    %c0_36 = arith.constant 0 : index
    %c0_37 = arith.constant 0 : index
    %c0_38 = arith.constant 0 : index
    %c0_39 = arith.constant 0 : index
    %37 = vector.load %arg2[%c0_36, %c0_37, %c0_38, %c0_39] : memref<1x4x27x256xf32, #tpu.memory_space<vmem>>, vector<1x1x27x256xf32>
    %38 = vector.shape_cast %37 : vector<1x1x27x256xf32> to vector<27x256xf32>
    %39 = vector.broadcast %5 : vector<1x256xf32> to vector<27x256xf32>
    %40 = arith.mulf %39, %38 : vector<27x256xf32>
    %41 = arith.mulf %5, %5 : vector<1x256xf32>
    %c0_40 = arith.constant 0 : index
    %c1_41 = arith.constant 1 : index
    %c0_42 = arith.constant 0 : index
    %c0_43 = arith.constant 0 : index
    %42 = vector.load %arg2[%c0_40, %c1_41, %c0_42, %c0_43] : memref<1x4x27x256xf32, #tpu.memory_space<vmem>>, vector<1x1x27x256xf32>
    %43 = vector.shape_cast %42 : vector<1x1x27x256xf32> to vector<27x256xf32>
    %44 = vector.broadcast %11 : vector<1x256xf32> to vector<27x256xf32>
    %45 = arith.mulf %44, %43 : vector<27x256xf32>
    %46 = arith.addf %40, %45 : vector<27x256xf32>
    %47 = arith.mulf %11, %11 : vector<1x256xf32>
    %48 = arith.addf %41, %47 : vector<1x256xf32>
    %c0_44 = arith.constant 0 : index
    %c2_45 = arith.constant 2 : index
    %c0_46 = arith.constant 0 : index
    %c0_47 = arith.constant 0 : index
    %49 = vector.load %arg2[%c0_44, %c2_45, %c0_46, %c0_47] : memref<1x4x27x256xf32, #tpu.memory_space<vmem>>, vector<1x1x27x256xf32>
    %50 = vector.shape_cast %49 : vector<1x1x27x256xf32> to vector<27x256xf32>
    %51 = vector.broadcast %17 : vector<1x256xf32> to vector<27x256xf32>
    %52 = arith.mulf %51, %50 : vector<27x256xf32>
    %53 = arith.addf %46, %52 : vector<27x256xf32>
    %54 = arith.mulf %17, %17 : vector<1x256xf32>
    %55 = arith.addf %48, %54 : vector<1x256xf32>
    %c0_48 = arith.constant 0 : index
    %c3_49 = arith.constant 3 : index
    %c0_50 = arith.constant 0 : index
    %c0_51 = arith.constant 0 : index
    %56 = vector.load %arg2[%c0_48, %c3_49, %c0_50, %c0_51] : memref<1x4x27x256xf32, #tpu.memory_space<vmem>>, vector<1x1x27x256xf32>
    %57 = vector.shape_cast %56 : vector<1x1x27x256xf32> to vector<27x256xf32>
    %58 = vector.broadcast %23 : vector<1x256xf32> to vector<27x256xf32>
    %59 = arith.mulf %58, %57 : vector<27x256xf32>
    %60 = arith.addf %53, %59 : vector<27x256xf32>
    %61 = arith.mulf %23, %23 : vector<1x256xf32>
    %62 = arith.addf %55, %61 : vector<1x256xf32>
    %63 = arith.mulf %36, %60 : vector<27x256xf32>
    %cst_52 = arith.constant 3.000000e+00 : f32
    %64 = vector.broadcast %cst_52 : f32 to vector<1x256xf32>
    %65 = arith.mulf %64, %62 : vector<1x256xf32>
    %66 = vector.broadcast %65 : vector<1x256xf32> to vector<27x256xf32>
    %67 = arith.mulf %66, %36 : vector<27x256xf32>
    %cst_53 = arith.constant 9.99999997E-7 : f32
    %68 = vector.broadcast %cst_53 : f32 to vector<27x256xf32>
    %69 = arith.addf %67, %68 : vector<27x256xf32>
    %70 = tpu.reciprocal %69 {approx = true} : vector<27x256xf32> -> vector<27x256xf32>
    %71 = arith.mulf %69, %70 : vector<27x256xf32>
    %cst_54 = arith.constant 2.000000e+00 : f32
    %72 = vector.broadcast %cst_54 : f32 to vector<27x256xf32>
    %73 = arith.subf %72, %71 : vector<27x256xf32>
    %74 = arith.mulf %70, %73 : vector<27x256xf32>
    %75 = arith.mulf %63, %74 : vector<27x256xf32>
    %76 = arith.mulf %75, %75 : vector<27x256xf32>
    %cst_55 = arith.constant dense<0.000000e+00> : vector<256xf32>
    %77 = vector.multi_reduction <add>, %76, %cst_55 [0] : vector<27x256xf32> to vector<256xf32>
    %78 = vector.shape_cast %77 : vector<256xf32> to vector<1x256xf32>
    %cst_56 = arith.constant 3.000000e+00 : f32
    %79 = vector.broadcast %cst_56 : f32 to vector<1x256xf32>
    %80 = arith.mulf %79, %78 : vector<1x256xf32>
    %c0_57 = arith.constant 0 : index
    %c0_58 = arith.constant 0 : index
    %c0_59 = arith.constant 0 : index
    %c0_60 = arith.constant 0 : index
    %81 = vector.load %arg2[%c0_57, %c0_58, %c0_59, %c0_60] : memref<1x4x27x256xf32, #tpu.memory_space<vmem>>, vector<1x1x27x256xf32>
    %82 = vector.shape_cast %81 : vector<1x1x27x256xf32> to vector<27x256xf32>
    %83 = arith.mulf %82, %75 : vector<27x256xf32>
    %cst_61 = arith.constant dense<0.000000e+00> : vector<256xf32>
    %84 = vector.multi_reduction <add>, %83, %cst_61 [0] : vector<27x256xf32> to vector<256xf32>
    %85 = vector.shape_cast %84 : vector<256xf32> to vector<1x256xf32>
    %86 = arith.mulf %5, %85 : vector<1x256xf32>
    %87 = arith.mulf %5, %80 : vector<1x256xf32>
    %cst_62 = arith.constant 9.99999997E-7 : f32
    %88 = vector.broadcast %cst_62 : f32 to vector<1x256xf32>
    %89 = arith.addf %87, %88 : vector<1x256xf32>
    %90 = tpu.reciprocal %89 {approx = true} : vector<1x256xf32> -> vector<1x256xf32>
    %91 = arith.mulf %89, %90 : vector<1x256xf32>
    %cst_63 = arith.constant 2.000000e+00 : f32
    %92 = vector.broadcast %cst_63 : f32 to vector<1x256xf32>
    %93 = arith.subf %92, %91 : vector<1x256xf32>
    %94 = arith.mulf %90, %93 : vector<1x256xf32>
    %95 = arith.mulf %86, %94 : vector<1x256xf32>
    %c0_64 = arith.constant 0 : index
    %c1_65 = arith.constant 1 : index
    %c0_66 = arith.constant 0 : index
    %c0_67 = arith.constant 0 : index
    %96 = vector.load %arg2[%c0_64, %c1_65, %c0_66, %c0_67] : memref<1x4x27x256xf32, #tpu.memory_space<vmem>>, vector<1x1x27x256xf32>
    %97 = vector.shape_cast %96 : vector<1x1x27x256xf32> to vector<27x256xf32>
    %98 = arith.mulf %97, %75 : vector<27x256xf32>
    %cst_68 = arith.constant dense<0.000000e+00> : vector<256xf32>
    %99 = vector.multi_reduction <add>, %98, %cst_68 [0] : vector<27x256xf32> to vector<256xf32>
    %100 = vector.shape_cast %99 : vector<256xf32> to vector<1x256xf32>
    %101 = arith.mulf %11, %100 : vector<1x256xf32>
    %102 = arith.mulf %11, %80 : vector<1x256xf32>
    %cst_69 = arith.constant 9.99999997E-7 : f32
    %103 = vector.broadcast %cst_69 : f32 to vector<1x256xf32>
    %104 = arith.addf %102, %103 : vector<1x256xf32>
    %105 = tpu.reciprocal %104 {approx = true} : vector<1x256xf32> -> vector<1x256xf32>
    %106 = arith.mulf %104, %105 : vector<1x256xf32>
    %cst_70 = arith.constant 2.000000e+00 : f32
    %107 = vector.broadcast %cst_70 : f32 to vector<1x256xf32>
    %108 = arith.subf %107, %106 : vector<1x256xf32>
    %109 = arith.mulf %105, %108 : vector<1x256xf32>
    %110 = arith.mulf %101, %109 : vector<1x256xf32>
    %c0_71 = arith.constant 0 : index
    %c2_72 = arith.constant 2 : index
    %c0_73 = arith.constant 0 : index
    %c0_74 = arith.constant 0 : index
    %111 = vector.load %arg2[%c0_71, %c2_72, %c0_73, %c0_74] : memref<1x4x27x256xf32, #tpu.memory_space<vmem>>, vector<1x1x27x256xf32>
    %112 = vector.shape_cast %111 : vector<1x1x27x256xf32> to vector<27x256xf32>
    %113 = arith.mulf %112, %75 : vector<27x256xf32>
    %cst_75 = arith.constant dense<0.000000e+00> : vector<256xf32>
    %114 = vector.multi_reduction <add>, %113, %cst_75 [0] : vector<27x256xf32> to vector<256xf32>
    %115 = vector.shape_cast %114 : vector<256xf32> to vector<1x256xf32>
    %116 = arith.mulf %17, %115 : vector<1x256xf32>
    %117 = arith.mulf %17, %80 : vector<1x256xf32>
    %cst_76 = arith.constant 9.99999997E-7 : f32
    %118 = vector.broadcast %cst_76 : f32 to vector<1x256xf32>
    %119 = arith.addf %117, %118 : vector<1x256xf32>
    %120 = tpu.reciprocal %119 {approx = true} : vector<1x256xf32> -> vector<1x256xf32>
    %121 = arith.mulf %119, %120 : vector<1x256xf32>
    %cst_77 = arith.constant 2.000000e+00 : f32
    %122 = vector.broadcast %cst_77 : f32 to vector<1x256xf32>
    %123 = arith.subf %122, %121 : vector<1x256xf32>
    %124 = arith.mulf %120, %123 : vector<1x256xf32>
    %125 = arith.mulf %116, %124 : vector<1x256xf32>
    %c0_78 = arith.constant 0 : index
    %c3_79 = arith.constant 3 : index
    %c0_80 = arith.constant 0 : index
    %c0_81 = arith.constant 0 : index
    %126 = vector.load %arg2[%c0_78, %c3_79, %c0_80, %c0_81] : memref<1x4x27x256xf32, #tpu.memory_space<vmem>>, vector<1x1x27x256xf32>
    %127 = vector.shape_cast %126 : vector<1x1x27x256xf32> to vector<27x256xf32>
    %128 = arith.mulf %127, %75 : vector<27x256xf32>
    %cst_82 = arith.constant dense<0.000000e+00> : vector<256xf32>
    %129 = vector.multi_reduction <add>, %128, %cst_82 [0] : vector<27x256xf32> to vector<256xf32>
    %130 = vector.shape_cast %129 : vector<256xf32> to vector<1x256xf32>
    %131 = arith.mulf %23, %130 : vector<1x256xf32>
    %132 = arith.mulf %23, %80 : vector<1x256xf32>
    %cst_83 = arith.constant 9.99999997E-7 : f32
    %133 = vector.broadcast %cst_83 : f32 to vector<1x256xf32>
    %134 = arith.addf %132, %133 : vector<1x256xf32>
    %135 = tpu.reciprocal %134 {approx = true} : vector<1x256xf32> -> vector<1x256xf32>
    %136 = arith.mulf %134, %135 : vector<1x256xf32>
    %cst_84 = arith.constant 2.000000e+00 : f32
    %137 = vector.broadcast %cst_84 : f32 to vector<1x256xf32>
    %138 = arith.subf %137, %136 : vector<1x256xf32>
    %139 = arith.mulf %135, %138 : vector<1x256xf32>
    %140 = arith.mulf %131, %139 : vector<1x256xf32>
    %c0_85 = arith.constant 0 : index
    %c0_86 = arith.constant 0 : index
    %c0_87 = arith.constant 0 : index
    %c0_88 = arith.constant 0 : index
    %141 = vector.load %arg2[%c0_85, %c0_86, %c0_87, %c0_88] : memref<1x4x27x256xf32, #tpu.memory_space<vmem>>, vector<1x1x27x256xf32>
    %142 = vector.shape_cast %141 : vector<1x1x27x256xf32> to vector<27x256xf32>
    %143 = vector.broadcast %95 : vector<1x256xf32> to vector<27x256xf32>
    %144 = arith.mulf %143, %142 : vector<27x256xf32>
    %145 = arith.mulf %95, %95 : vector<1x256xf32>
    %c0_89 = arith.constant 0 : index
    %c1_90 = arith.constant 1 : index
    %c0_91 = arith.constant 0 : index
    %c0_92 = arith.constant 0 : index
    %146 = vector.load %arg2[%c0_89, %c1_90, %c0_91, %c0_92] : memref<1x4x27x256xf32, #tpu.memory_space<vmem>>, vector<1x1x27x256xf32>
    %147 = vector.shape_cast %146 : vector<1x1x27x256xf32> to vector<27x256xf32>
    %148 = vector.broadcast %110 : vector<1x256xf32> to vector<27x256xf32>
    %149 = arith.mulf %148, %147 : vector<27x256xf32>
    %150 = arith.addf %144, %149 : vector<27x256xf32>
    %151 = arith.mulf %110, %110 : vector<1x256xf32>
    %152 = arith.addf %145, %151 : vector<1x256xf32>
    %c0_93 = arith.constant 0 : index
    %c2_94 = arith.constant 2 : index
    %c0_95 = arith.constant 0 : index
    %c0_96 = arith.constant 0 : index
    %153 = vector.load %arg2[%c0_93, %c2_94, %c0_95, %c0_96] : memref<1x4x27x256xf32, #tpu.memory_space<vmem>>, vector<1x1x27x256xf32>
    %154 = vector.shape_cast %153 : vector<1x1x27x256xf32> to vector<27x256xf32>
    %155 = vector.broadcast %125 : vector<1x256xf32> to vector<27x256xf32>
    %156 = arith.mulf %155, %154 : vector<27x256xf32>
    %157 = arith.addf %150, %156 : vector<27x256xf32>
    %158 = arith.mulf %125, %125 : vector<1x256xf32>
    %159 = arith.addf %152, %158 : vector<1x256xf32>
    %c0_97 = arith.constant 0 : index
    %c3_98 = arith.constant 3 : index
    %c0_99 = arith.constant 0 : index
    %c0_100 = arith.constant 0 : index
    %160 = vector.load %arg2[%c0_97, %c3_98, %c0_99, %c0_100] : memref<1x4x27x256xf32, #tpu.memory_space<vmem>>, vector<1x1x27x256xf32>
    %161 = vector.shape_cast %160 : vector<1x1x27x256xf32> to vector<27x256xf32>
    %162 = vector.broadcast %140 : vector<1x256xf32> to vector<27x256xf32>
    %163 = arith.mulf %162, %161 : vector<27x256xf32>
    %164 = arith.addf %157, %163 : vector<27x256xf32>
    %165 = arith.mulf %140, %140 : vector<1x256xf32>
    %166 = arith.addf %159, %165 : vector<1x256xf32>
    %167 = arith.mulf %75, %164 : vector<27x256xf32>
    %cst_101 = arith.constant 3.000000e+00 : f32
    %168 = vector.broadcast %cst_101 : f32 to vector<1x256xf32>
    %169 = arith.mulf %168, %166 : vector<1x256xf32>
    %170 = vector.broadcast %169 : vector<1x256xf32> to vector<27x256xf32>
    %171 = arith.mulf %170, %75 : vector<27x256xf32>
    %cst_102 = arith.constant 9.99999997E-7 : f32
    %172 = vector.broadcast %cst_102 : f32 to vector<27x256xf32>
    %173 = arith.addf %171, %172 : vector<27x256xf32>
    %174 = tpu.reciprocal %173 {approx = true} : vector<27x256xf32> -> vector<27x256xf32>
    %175 = arith.mulf %173, %174 : vector<27x256xf32>
    %cst_103 = arith.constant 2.000000e+00 : f32
    %176 = vector.broadcast %cst_103 : f32 to vector<27x256xf32>
    %177 = arith.subf %176, %175 : vector<27x256xf32>
    %178 = arith.mulf %174, %177 : vector<27x256xf32>
    %179 = arith.mulf %167, %178 : vector<27x256xf32>
    %180 = arith.mulf %179, %179 : vector<27x256xf32>
    %cst_104 = arith.constant dense<0.000000e+00> : vector<256xf32>
    %181 = vector.multi_reduction <add>, %180, %cst_104 [0] : vector<27x256xf32> to vector<256xf32>
    %182 = vector.shape_cast %181 : vector<256xf32> to vector<1x256xf32>
    %cst_105 = arith.constant 3.000000e+00 : f32
    %183 = vector.broadcast %cst_105 : f32 to vector<1x256xf32>
    %184 = arith.mulf %183, %182 : vector<1x256xf32>
    %c0_106 = arith.constant 0 : index
    %c0_107 = arith.constant 0 : index
    %c0_108 = arith.constant 0 : index
    %c0_109 = arith.constant 0 : index
    %185 = vector.load %arg2[%c0_106, %c0_107, %c0_108, %c0_109] : memref<1x4x27x256xf32, #tpu.memory_space<vmem>>, vector<1x1x27x256xf32>
    %186 = vector.shape_cast %185 : vector<1x1x27x256xf32> to vector<27x256xf32>
    %187 = arith.mulf %186, %179 : vector<27x256xf32>
    %cst_110 = arith.constant dense<0.000000e+00> : vector<256xf32>
    %188 = vector.multi_reduction <add>, %187, %cst_110 [0] : vector<27x256xf32> to vector<256xf32>
    %189 = vector.shape_cast %188 : vector<256xf32> to vector<1x256xf32>
    %190 = arith.mulf %95, %189 : vector<1x256xf32>
    %191 = arith.mulf %95, %184 : vector<1x256xf32>
    %cst_111 = arith.constant 9.99999997E-7 : f32
    %192 = vector.broadcast %cst_111 : f32 to vector<1x256xf32>
    %193 = arith.addf %191, %192 : vector<1x256xf32>
    %194 = tpu.reciprocal %193 {approx = true} : vector<1x256xf32> -> vector<1x256xf32>
    %195 = arith.mulf %193, %194 : vector<1x256xf32>
    %cst_112 = arith.constant 2.000000e+00 : f32
    %196 = vector.broadcast %cst_112 : f32 to vector<1x256xf32>
    %197 = arith.subf %196, %195 : vector<1x256xf32>
    %198 = arith.mulf %194, %197 : vector<1x256xf32>
    %199 = arith.mulf %190, %198 : vector<1x256xf32>
    %c0_113 = arith.constant 0 : index
    %c1_114 = arith.constant 1 : index
    %c0_115 = arith.constant 0 : index
    %c0_116 = arith.constant 0 : index
    %200 = vector.load %arg2[%c0_113, %c1_114, %c0_115, %c0_116] : memref<1x4x27x256xf32, #tpu.memory_space<vmem>>, vector<1x1x27x256xf32>
    %201 = vector.shape_cast %200 : vector<1x1x27x256xf32> to vector<27x256xf32>
    %202 = arith.mulf %201, %179 : vector<27x256xf32>
    %cst_117 = arith.constant dense<0.000000e+00> : vector<256xf32>
    %203 = vector.multi_reduction <add>, %202, %cst_117 [0] : vector<27x256xf32> to vector<256xf32>
    %204 = vector.shape_cast %203 : vector<256xf32> to vector<1x256xf32>
    %205 = arith.mulf %110, %204 : vector<1x256xf32>
    %206 = arith.mulf %110, %184 : vector<1x256xf32>
    %cst_118 = arith.constant 9.99999997E-7 : f32
    %207 = vector.broadcast %cst_118 : f32 to vector<1x256xf32>
    %208 = arith.addf %206, %207 : vector<1x256xf32>
    %209 = tpu.reciprocal %208 {approx = true} : vector<1x256xf32> -> vector<1x256xf32>
    %210 = arith.mulf %208, %209 : vector<1x256xf32>
    %cst_119 = arith.constant 2.000000e+00 : f32
    %211 = vector.broadcast %cst_119 : f32 to vector<1x256xf32>
    %212 = arith.subf %211, %210 : vector<1x256xf32>
    %213 = arith.mulf %209, %212 : vector<1x256xf32>
    %214 = arith.mulf %205, %213 : vector<1x256xf32>
    %c0_120 = arith.constant 0 : index
    %c2_121 = arith.constant 2 : index
    %c0_122 = arith.constant 0 : index
    %c0_123 = arith.constant 0 : index
    %215 = vector.load %arg2[%c0_120, %c2_121, %c0_122, %c0_123] : memref<1x4x27x256xf32, #tpu.memory_space<vmem>>, vector<1x1x27x256xf32>
    %216 = vector.shape_cast %215 : vector<1x1x27x256xf32> to vector<27x256xf32>
    %217 = arith.mulf %216, %179 : vector<27x256xf32>
    %cst_124 = arith.constant dense<0.000000e+00> : vector<256xf32>
    %218 = vector.multi_reduction <add>, %217, %cst_124 [0] : vector<27x256xf32> to vector<256xf32>
    %219 = vector.shape_cast %218 : vector<256xf32> to vector<1x256xf32>
    %220 = arith.mulf %125, %219 : vector<1x256xf32>
    %221 = arith.mulf %125, %184 : vector<1x256xf32>
    %cst_125 = arith.constant 9.99999997E-7 : f32
    %222 = vector.broadcast %cst_125 : f32 to vector<1x256xf32>
    %223 = arith.addf %221, %222 : vector<1x256xf32>
    %224 = tpu.reciprocal %223 {approx = true} : vector<1x256xf32> -> vector<1x256xf32>
    %225 = arith.mulf %223, %224 : vector<1x256xf32>
    %cst_126 = arith.constant 2.000000e+00 : f32
    %226 = vector.broadcast %cst_126 : f32 to vector<1x256xf32>
    %227 = arith.subf %226, %225 : vector<1x256xf32>
    %228 = arith.mulf %224, %227 : vector<1x256xf32>
    %229 = arith.mulf %220, %228 : vector<1x256xf32>
    %c0_127 = arith.constant 0 : index
    %c3_128 = arith.constant 3 : index
    %c0_129 = arith.constant 0 : index
    %c0_130 = arith.constant 0 : index
    %230 = vector.load %arg2[%c0_127, %c3_128, %c0_129, %c0_130] : memref<1x4x27x256xf32, #tpu.memory_space<vmem>>, vector<1x1x27x256xf32>
    %231 = vector.shape_cast %230 : vector<1x1x27x256xf32> to vector<27x256xf32>
    %232 = arith.mulf %231, %179 : vector<27x256xf32>
    %cst_131 = arith.constant dense<0.000000e+00> : vector<256xf32>
    %233 = vector.multi_reduction <add>, %232, %cst_131 [0] : vector<27x256xf32> to vector<256xf32>
    %234 = vector.shape_cast %233 : vector<256xf32> to vector<1x256xf32>
    %235 = arith.mulf %140, %234 : vector<1x256xf32>
    %236 = arith.mulf %140, %184 : vector<1x256xf32>
    %cst_132 = arith.constant 9.99999997E-7 : f32
    %237 = vector.broadcast %cst_132 : f32 to vector<1x256xf32>
    %238 = arith.addf %236, %237 : vector<1x256xf32>
    %239 = tpu.reciprocal %238 {approx = true} : vector<1x256xf32> -> vector<1x256xf32>
    %240 = arith.mulf %238, %239 : vector<1x256xf32>
    %cst_133 = arith.constant 2.000000e+00 : f32
    %241 = vector.broadcast %cst_133 : f32 to vector<1x256xf32>
    %242 = arith.subf %241, %240 : vector<1x256xf32>
    %243 = arith.mulf %239, %242 : vector<1x256xf32>
    %244 = arith.mulf %235, %243 : vector<1x256xf32>
    %c0_134 = arith.constant 0 : index
    %c0_135 = arith.constant 0 : index
    %c0_136 = arith.constant 0 : index
    %c0_137 = arith.constant 0 : index
    %245 = vector.load %arg2[%c0_134, %c0_135, %c0_136, %c0_137] : memref<1x4x27x256xf32, #tpu.memory_space<vmem>>, vector<1x1x27x256xf32>
    %246 = vector.shape_cast %245 : vector<1x1x27x256xf32> to vector<27x256xf32>
    %247 = vector.broadcast %199 : vector<1x256xf32> to vector<27x256xf32>
    %248 = arith.mulf %247, %246 : vector<27x256xf32>
    %249 = arith.mulf %199, %199 : vector<1x256xf32>
    %c0_138 = arith.constant 0 : index
    %c1_139 = arith.constant 1 : index
    %c0_140 = arith.constant 0 : index
    %c0_141 = arith.constant 0 : index
    %250 = vector.load %arg2[%c0_138, %c1_139, %c0_140, %c0_141] : memref<1x4x27x256xf32, #tpu.memory_space<vmem>>, vector<1x1x27x256xf32>
    %251 = vector.shape_cast %250 : vector<1x1x27x256xf32> to vector<27x256xf32>
    %252 = vector.broadcast %214 : vector<1x256xf32> to vector<27x256xf32>
    %253 = arith.mulf %252, %251 : vector<27x256xf32>
    %254 = arith.addf %248, %253 : vector<27x256xf32>
    %255 = arith.mulf %214, %214 : vector<1x256xf32>
    %256 = arith.addf %249, %255 : vector<1x256xf32>
    %c0_142 = arith.constant 0 : index
    %c2_143 = arith.constant 2 : index
    %c0_144 = arith.constant 0 : index
    %c0_145 = arith.constant 0 : index
    %257 = vector.load %arg2[%c0_142, %c2_143, %c0_144, %c0_145] : memref<1x4x27x256xf32, #tpu.memory_space<vmem>>, vector<1x1x27x256xf32>
    %258 = vector.shape_cast %257 : vector<1x1x27x256xf32> to vector<27x256xf32>
    %259 = vector.broadcast %229 : vector<1x256xf32> to vector<27x256xf32>
    %260 = arith.mulf %259, %258 : vector<27x256xf32>
    %261 = arith.addf %254, %260 : vector<27x256xf32>
    %262 = arith.mulf %229, %229 : vector<1x256xf32>
    %263 = arith.addf %256, %262 : vector<1x256xf32>
    %c0_146 = arith.constant 0 : index
    %c3_147 = arith.constant 3 : index
    %c0_148 = arith.constant 0 : index
    %c0_149 = arith.constant 0 : index
    %264 = vector.load %arg2[%c0_146, %c3_147, %c0_148, %c0_149] : memref<1x4x27x256xf32, #tpu.memory_space<vmem>>, vector<1x1x27x256xf32>
    %265 = vector.shape_cast %264 : vector<1x1x27x256xf32> to vector<27x256xf32>
    %266 = vector.broadcast %244 : vector<1x256xf32> to vector<27x256xf32>
    %267 = arith.mulf %266, %265 : vector<27x256xf32>
    %268 = arith.addf %261, %267 : vector<27x256xf32>
    %269 = arith.mulf %244, %244 : vector<1x256xf32>
    %270 = arith.addf %263, %269 : vector<1x256xf32>
    %271 = arith.mulf %179, %268 : vector<27x256xf32>
    %cst_150 = arith.constant 3.000000e+00 : f32
    %272 = vector.broadcast %cst_150 : f32 to vector<1x256xf32>
    %273 = arith.mulf %272, %270 : vector<1x256xf32>
    %274 = vector.broadcast %273 : vector<1x256xf32> to vector<27x256xf32>
    %275 = arith.mulf %274, %179 : vector<27x256xf32>
    %cst_151 = arith.constant 9.99999997E-7 : f32
    %276 = vector.broadcast %cst_151 : f32 to vector<27x256xf32>
    %277 = arith.addf %275, %276 : vector<27x256xf32>
    %278 = tpu.reciprocal %277 {approx = true} : vector<27x256xf32> -> vector<27x256xf32>
    %279 = arith.mulf %277, %278 : vector<27x256xf32>
    %cst_152 = arith.constant 2.000000e+00 : f32
    %280 = vector.broadcast %cst_152 : f32 to vector<27x256xf32>
    %281 = arith.subf %280, %279 : vector<27x256xf32>
    %282 = arith.mulf %278, %281 : vector<27x256xf32>
    %283 = arith.mulf %271, %282 : vector<27x256xf32>
    %284 = arith.mulf %283, %283 : vector<27x256xf32>
    %cst_153 = arith.constant dense<0.000000e+00> : vector<256xf32>
    %285 = vector.multi_reduction <add>, %284, %cst_153 [0] : vector<27x256xf32> to vector<256xf32>
    %286 = vector.shape_cast %285 : vector<256xf32> to vector<1x256xf32>
    %cst_154 = arith.constant 3.000000e+00 : f32
    %287 = vector.broadcast %cst_154 : f32 to vector<1x256xf32>
    %288 = arith.mulf %287, %286 : vector<1x256xf32>
    %c0_155 = arith.constant 0 : index
    %c0_156 = arith.constant 0 : index
    %c0_157 = arith.constant 0 : index
    %c0_158 = arith.constant 0 : index
    %289 = vector.load %arg2[%c0_155, %c0_156, %c0_157, %c0_158] : memref<1x4x27x256xf32, #tpu.memory_space<vmem>>, vector<1x1x27x256xf32>
    %290 = vector.shape_cast %289 : vector<1x1x27x256xf32> to vector<27x256xf32>
    %291 = arith.mulf %290, %283 : vector<27x256xf32>
    %cst_159 = arith.constant dense<0.000000e+00> : vector<256xf32>
    %292 = vector.multi_reduction <add>, %291, %cst_159 [0] : vector<27x256xf32> to vector<256xf32>
    %293 = vector.shape_cast %292 : vector<256xf32> to vector<1x256xf32>
    %294 = arith.mulf %199, %293 : vector<1x256xf32>
    %295 = arith.mulf %199, %288 : vector<1x256xf32>
    %cst_160 = arith.constant 9.99999997E-7 : f32
    %296 = vector.broadcast %cst_160 : f32 to vector<1x256xf32>
    %297 = arith.addf %295, %296 : vector<1x256xf32>
    %298 = tpu.reciprocal %297 {approx = true} : vector<1x256xf32> -> vector<1x256xf32>
    %299 = arith.mulf %297, %298 : vector<1x256xf32>
    %cst_161 = arith.constant 2.000000e+00 : f32
    %300 = vector.broadcast %cst_161 : f32 to vector<1x256xf32>
    %301 = arith.subf %300, %299 : vector<1x256xf32>
    %302 = arith.mulf %298, %301 : vector<1x256xf32>
    %303 = arith.mulf %294, %302 : vector<1x256xf32>
    %c0_162 = arith.constant 0 : index
    %c1_163 = arith.constant 1 : index
    %c0_164 = arith.constant 0 : index
    %c0_165 = arith.constant 0 : index
    %304 = vector.load %arg2[%c0_162, %c1_163, %c0_164, %c0_165] : memref<1x4x27x256xf32, #tpu.memory_space<vmem>>, vector<1x1x27x256xf32>
    %305 = vector.shape_cast %304 : vector<1x1x27x256xf32> to vector<27x256xf32>
    %306 = arith.mulf %305, %283 : vector<27x256xf32>
    %cst_166 = arith.constant dense<0.000000e+00> : vector<256xf32>
    %307 = vector.multi_reduction <add>, %306, %cst_166 [0] : vector<27x256xf32> to vector<256xf32>
    %308 = vector.shape_cast %307 : vector<256xf32> to vector<1x256xf32>
    %309 = arith.mulf %214, %308 : vector<1x256xf32>
    %310 = arith.mulf %214, %288 : vector<1x256xf32>
    %cst_167 = arith.constant 9.99999997E-7 : f32
    %311 = vector.broadcast %cst_167 : f32 to vector<1x256xf32>
    %312 = arith.addf %310, %311 : vector<1x256xf32>
    %313 = tpu.reciprocal %312 {approx = true} : vector<1x256xf32> -> vector<1x256xf32>
    %314 = arith.mulf %312, %313 : vector<1x256xf32>
    %cst_168 = arith.constant 2.000000e+00 : f32
    %315 = vector.broadcast %cst_168 : f32 to vector<1x256xf32>
    %316 = arith.subf %315, %314 : vector<1x256xf32>
    %317 = arith.mulf %313, %316 : vector<1x256xf32>
    %318 = arith.mulf %309, %317 : vector<1x256xf32>
    %c0_169 = arith.constant 0 : index
    %c2_170 = arith.constant 2 : index
    %c0_171 = arith.constant 0 : index
    %c0_172 = arith.constant 0 : index
    %319 = vector.load %arg2[%c0_169, %c2_170, %c0_171, %c0_172] : memref<1x4x27x256xf32, #tpu.memory_space<vmem>>, vector<1x1x27x256xf32>
    %320 = vector.shape_cast %319 : vector<1x1x27x256xf32> to vector<27x256xf32>
    %321 = arith.mulf %320, %283 : vector<27x256xf32>
    %cst_173 = arith.constant dense<0.000000e+00> : vector<256xf32>
    %322 = vector.multi_reduction <add>, %321, %cst_173 [0] : vector<27x256xf32> to vector<256xf32>
    %323 = vector.shape_cast %322 : vector<256xf32> to vector<1x256xf32>
    %324 = arith.mulf %229, %323 : vector<1x256xf32>
    %325 = arith.mulf %229, %288 : vector<1x256xf32>
    %cst_174 = arith.constant 9.99999997E-7 : f32
    %326 = vector.broadcast %cst_174 : f32 to vector<1x256xf32>
    %327 = arith.addf %325, %326 : vector<1x256xf32>
    %328 = tpu.reciprocal %327 {approx = true} : vector<1x256xf32> -> vector<1x256xf32>
    %329 = arith.mulf %327, %328 : vector<1x256xf32>
    %cst_175 = arith.constant 2.000000e+00 : f32
    %330 = vector.broadcast %cst_175 : f32 to vector<1x256xf32>
    %331 = arith.subf %330, %329 : vector<1x256xf32>
    %332 = arith.mulf %328, %331 : vector<1x256xf32>
    %333 = arith.mulf %324, %332 : vector<1x256xf32>
    %c0_176 = arith.constant 0 : index
    %c3_177 = arith.constant 3 : index
    %c0_178 = arith.constant 0 : index
    %c0_179 = arith.constant 0 : index
    %334 = vector.load %arg2[%c0_176, %c3_177, %c0_178, %c0_179] : memref<1x4x27x256xf32, #tpu.memory_space<vmem>>, vector<1x1x27x256xf32>
    %335 = vector.shape_cast %334 : vector<1x1x27x256xf32> to vector<27x256xf32>
    %336 = arith.mulf %335, %283 : vector<27x256xf32>
    %cst_180 = arith.constant dense<0.000000e+00> : vector<256xf32>
    %337 = vector.multi_reduction <add>, %336, %cst_180 [0] : vector<27x256xf32> to vector<256xf32>
    %338 = vector.shape_cast %337 : vector<256xf32> to vector<1x256xf32>
    %339 = arith.mulf %244, %338 : vector<1x256xf32>
    %340 = arith.mulf %244, %288 : vector<1x256xf32>
    %cst_181 = arith.constant 9.99999997E-7 : f32
    %341 = vector.broadcast %cst_181 : f32 to vector<1x256xf32>
    %342 = arith.addf %340, %341 : vector<1x256xf32>
    %343 = tpu.reciprocal %342 {approx = true} : vector<1x256xf32> -> vector<1x256xf32>
    %344 = arith.mulf %342, %343 : vector<1x256xf32>
    %cst_182 = arith.constant 2.000000e+00 : f32
    %345 = vector.broadcast %cst_182 : f32 to vector<1x256xf32>
    %346 = arith.subf %345, %344 : vector<1x256xf32>
    %347 = arith.mulf %343, %346 : vector<1x256xf32>
    %348 = arith.mulf %339, %347 : vector<1x256xf32>
    %349 = vector.extract_strided_slice %283 {offsets = [13, 0], sizes = [1, 256], strides = [1, 1]} : vector<27x256xf32> to vector<1x256xf32>
    %350 = arith.mulf %303, %349 : vector<1x256xf32>
    %351 = arith.mulf %318, %349 : vector<1x256xf32>
    %352 = arith.mulf %333, %349 : vector<1x256xf32>
    %353 = arith.mulf %348, %349 : vector<1x256xf32>
    %c0_183 = arith.constant 0 : index
    %c0_184 = arith.constant 0 : index
    %354 = memref.load %arg3[%c0_183, %c0_184] : memref<4x4xf32, #tpu.memory_space<smem>>
    %355 = vector.broadcast %354 : f32 to vector<1x256xf32>
    %356 = arith.mulf %355, %350 : vector<1x256xf32>
    %c0_185 = arith.constant 0 : index
    %c1_186 = arith.constant 1 : index
    %357 = memref.load %arg3[%c0_185, %c1_186] : memref<4x4xf32, #tpu.memory_space<smem>>
    %358 = vector.broadcast %357 : f32 to vector<1x256xf32>
    %359 = arith.mulf %358, %351 : vector<1x256xf32>
    %360 = arith.addf %356, %359 : vector<1x256xf32>
    %c0_187 = arith.constant 0 : index
    %c2_188 = arith.constant 2 : index
    %361 = memref.load %arg3[%c0_187, %c2_188] : memref<4x4xf32, #tpu.memory_space<smem>>
    %362 = vector.broadcast %361 : f32 to vector<1x256xf32>
    %363 = arith.mulf %362, %352 : vector<1x256xf32>
    %364 = arith.addf %360, %363 : vector<1x256xf32>
    %c0_189 = arith.constant 0 : index
    %c3_190 = arith.constant 3 : index
    %365 = memref.load %arg3[%c0_189, %c3_190] : memref<4x4xf32, #tpu.memory_space<smem>>
    %366 = vector.broadcast %365 : f32 to vector<1x256xf32>
    %367 = arith.mulf %366, %353 : vector<1x256xf32>
    %368 = arith.addf %364, %367 : vector<1x256xf32>
    %cst_191 = arith.constant 3.000000e+00 : f32
    %369 = vector.broadcast %cst_191 : f32 to vector<1x256xf32>
    %370 = arith.mulf %369, %368 : vector<1x256xf32>
    %cst_192 = arith.constant 0.000000e+00 : f32
    %371 = vector.broadcast %cst_192 : f32 to vector<1x256xf32>
    %372 = arith.maximumf %370, %371 : vector<1x256xf32>
    %c0_193 = arith.constant 0 : index
    %c0_194 = arith.constant 0 : index
    %c0_195 = arith.constant 0 : index
    %373 = vector.load %arg4[%c0_193, %c0_194, %c0_195] : memref<1x4x256xf32, #tpu.memory_space<vmem>>, vector<1x1x256xf32>
    %374 = vector.shape_cast %373 : vector<1x1x256xf32> to vector<1x256xf32>
    %375 = vector.shape_cast %372 : vector<1x256xf32> to vector<1x1x256xf32>
    tpu.vector_store %arg4[%c0_193, %c0_194, %c0_195], %375 {strides = array<i32>} : memref<1x4x256xf32, #tpu.memory_space<vmem>>, vector<1x1x256xf32>,
    %c1_196 = arith.constant 1 : index
    %c0_197 = arith.constant 0 : index
    %376 = memref.load %arg3[%c1_196, %c0_197] : memref<4x4xf32, #tpu.memory_space<smem>>
    %377 = vector.broadcast %376 : f32 to vector<1x256xf32>
    %378 = arith.mulf %377, %350 : vector<1x256xf32>
    %c1_198 = arith.constant 1 : index
    %c1_199 = arith.constant 1 : index
    %379 = memref.load %arg3[%c1_198, %c1_199] : memref<4x4xf32, #tpu.memory_space<smem>>
    %380 = vector.broadcast %379 : f32 to vector<1x256xf32>
    %381 = arith.mulf %380, %351 : vector<1x256xf32>
    %382 = arith.addf %378, %381 : vector<1x256xf32>
    %c1_200 = arith.constant 1 : index
    %c2_201 = arith.constant 2 : index
    %383 = memref.load %arg3[%c1_200, %c2_201] : memref<4x4xf32, #tpu.memory_space<smem>>
    %384 = vector.broadcast %383 : f32 to vector<1x256xf32>
    %385 = arith.mulf %384, %352 : vector<1x256xf32>
    %386 = arith.addf %382, %385 : vector<1x256xf32>
    %c1_202 = arith.constant 1 : index
    %c3_203 = arith.constant 3 : index
    %387 = memref.load %arg3[%c1_202, %c3_203] : memref<4x4xf32, #tpu.memory_space<smem>>
    %388 = vector.broadcast %387 : f32 to vector<1x256xf32>
    %389 = arith.mulf %388, %353 : vector<1x256xf32>
    %390 = arith.addf %386, %389 : vector<1x256xf32>
    %cst_204 = arith.constant 3.000000e+00 : f32
    %391 = vector.broadcast %cst_204 : f32 to vector<1x256xf32>
    %392 = arith.mulf %391, %390 : vector<1x256xf32>
    %cst_205 = arith.constant 0.000000e+00 : f32
    %393 = vector.broadcast %cst_205 : f32 to vector<1x256xf32>
    %394 = arith.maximumf %392, %393 : vector<1x256xf32>
    %c0_206 = arith.constant 0 : index
    %c1_207 = arith.constant 1 : index
    %c0_208 = arith.constant 0 : index
    %395 = vector.load %arg4[%c0_206, %c1_207, %c0_208] : memref<1x4x256xf32, #tpu.memory_space<vmem>>, vector<1x1x256xf32>
    %396 = vector.shape_cast %395 : vector<1x1x256xf32> to vector<1x256xf32>
    %397 = vector.shape_cast %394 : vector<1x256xf32> to vector<1x1x256xf32>
    tpu.vector_store %arg4[%c0_206, %c1_207, %c0_208], %397 {strides = array<i32>} : memref<1x4x256xf32, #tpu.memory_space<vmem>>, vector<1x1x256xf32>,
    %c2_209 = arith.constant 2 : index
    %c0_210 = arith.constant 0 : index
    %398 = memref.load %arg3[%c2_209, %c0_210] : memref<4x4xf32, #tpu.memory_space<smem>>
    %399 = vector.broadcast %398 : f32 to vector<1x256xf32>
    %400 = arith.mulf %399, %350 : vector<1x256xf32>
    %c2_211 = arith.constant 2 : index
    %c1_212 = arith.constant 1 : index
    %401 = memref.load %arg3[%c2_211, %c1_212] : memref<4x4xf32, #tpu.memory_space<smem>>
    %402 = vector.broadcast %401 : f32 to vector<1x256xf32>
    %403 = arith.mulf %402, %351 : vector<1x256xf32>
    %404 = arith.addf %400, %403 : vector<1x256xf32>
    %c2_213 = arith.constant 2 : index
    %c2_214 = arith.constant 2 : index
    %405 = memref.load %arg3[%c2_213, %c2_214] : memref<4x4xf32, #tpu.memory_space<smem>>
    %406 = vector.broadcast %405 : f32 to vector<1x256xf32>
    %407 = arith.mulf %406, %352 : vector<1x256xf32>
    %408 = arith.addf %404, %407 : vector<1x256xf32>
    %c2_215 = arith.constant 2 : index
    %c3_216 = arith.constant 3 : index
    %409 = memref.load %arg3[%c2_215, %c3_216] : memref<4x4xf32, #tpu.memory_space<smem>>
    %410 = vector.broadcast %409 : f32 to vector<1x256xf32>
    %411 = arith.mulf %410, %353 : vector<1x256xf32>
    %412 = arith.addf %408, %411 : vector<1x256xf32>
    %cst_217 = arith.constant 3.000000e+00 : f32
    %413 = vector.broadcast %cst_217 : f32 to vector<1x256xf32>
    %414 = arith.mulf %413, %412 : vector<1x256xf32>
    %cst_218 = arith.constant 0.000000e+00 : f32
    %415 = vector.broadcast %cst_218 : f32 to vector<1x256xf32>
    %416 = arith.maximumf %414, %415 : vector<1x256xf32>
    %c0_219 = arith.constant 0 : index
    %c2_220 = arith.constant 2 : index
    %c0_221 = arith.constant 0 : index
    %417 = vector.load %arg4[%c0_219, %c2_220, %c0_221] : memref<1x4x256xf32, #tpu.memory_space<vmem>>, vector<1x1x256xf32>
    %418 = vector.shape_cast %417 : vector<1x1x256xf32> to vector<1x256xf32>
    %419 = vector.shape_cast %416 : vector<1x256xf32> to vector<1x1x256xf32>
    tpu.vector_store %arg4[%c0_219, %c2_220, %c0_221], %419 {strides = array<i32>} : memref<1x4x256xf32, #tpu.memory_space<vmem>>, vector<1x1x256xf32>,
    %c3_222 = arith.constant 3 : index
    %c0_223 = arith.constant 0 : index
    %420 = memref.load %arg3[%c3_222, %c0_223] : memref<4x4xf32, #tpu.memory_space<smem>>
    %421 = vector.broadcast %420 : f32 to vector<1x256xf32>
    %422 = arith.mulf %421, %350 : vector<1x256xf32>
    %c3_224 = arith.constant 3 : index
    %c1_225 = arith.constant 1 : index
    %423 = memref.load %arg3[%c3_224, %c1_225] : memref<4x4xf32, #tpu.memory_space<smem>>
    %424 = vector.broadcast %423 : f32 to vector<1x256xf32>
    %425 = arith.mulf %424, %351 : vector<1x256xf32>
    %426 = arith.addf %422, %425 : vector<1x256xf32>
    %c3_226 = arith.constant 3 : index
    %c2_227 = arith.constant 2 : index
    %427 = memref.load %arg3[%c3_226, %c2_227] : memref<4x4xf32, #tpu.memory_space<smem>>
    %428 = vector.broadcast %427 : f32 to vector<1x256xf32>
    %429 = arith.mulf %428, %352 : vector<1x256xf32>
    %430 = arith.addf %426, %429 : vector<1x256xf32>
    %c3_228 = arith.constant 3 : index
    %c3_229 = arith.constant 3 : index
    %431 = memref.load %arg3[%c3_228, %c3_229] : memref<4x4xf32, #tpu.memory_space<smem>>
    %432 = vector.broadcast %431 : f32 to vector<1x256xf32>
    %433 = arith.mulf %432, %353 : vector<1x256xf32>
    %434 = arith.addf %430, %433 : vector<1x256xf32>
    %cst_230 = arith.constant 3.000000e+00 : f32
    %435 = vector.broadcast %cst_230 : f32 to vector<1x256xf32>
    %436 = arith.mulf %435, %434 : vector<1x256xf32>
    %cst_231 = arith.constant 0.000000e+00 : f32
    %437 = vector.broadcast %cst_231 : f32 to vector<1x256xf32>
    %438 = arith.maximumf %436, %437 : vector<1x256xf32>
    %c0_232 = arith.constant 0 : index
    %c3_233 = arith.constant 3 : index
    %c0_234 = arith.constant 0 : index
    %439 = vector.load %arg4[%c0_232, %c3_233, %c0_234] : memref<1x4x256xf32, #tpu.memory_space<vmem>>, vector<1x1x256xf32>
    %440 = vector.shape_cast %439 : vector<1x1x256xf32> to vector<1x256xf32>
    %441 = vector.shape_cast %438 : vector<1x256xf32> to vector<1x1x256xf32>
    tpu.vector_store %arg4[%c0_232, %c3_233, %c0_234], %441 {strides = array<i32>} : memref<1x4x256xf32, #tpu.memory_space<vmem>>, vector<1x1x256xf32>,
    return
  }
  func.func @transform_0(%arg0: i32, %arg1: i32) -> (i32, i32, i32, i32) {
    %c0_i32 = arith.constant 0 : i32
    %c0_i32_0 = arith.constant 0 : i32
    %c0_i32_1 = arith.constant 0 : i32
    return %arg0, %c0_i32, %c0_i32_0, %arg1 : i32, i32, i32, i32
  }
  func.func @transform_1(%arg0: i32, %arg1: i32) -> (i32, i32) {
    %c0_i32 = arith.constant 0 : i32
    %c0_i32_0 = arith.constant 0 : i32
    %c0_i32_1 = arith.constant 0 : i32
    return %c0_i32, %c0_i32_0 : i32, i32
  }
  func.func @transform_2(%arg0: i32, %arg1: i32) -> (i32, i32, i32) {
    %c0_i32 = arith.constant 0 : i32
    %c0_i32_0 = arith.constant 0 : i32
    return %arg0, %c0_i32, %arg1 : i32, i32, i32
  }
}

</mosaic_0001>

<llo_original>
// kernel: tpu_custom_call.1
$region0: #{tpu_custom_call.1}
  #allocation0 [shape = 'u32[]', space=smem, size = 0x4, offset = 0x4, fixed_abs, tag = 'smem constant byte address 0x4 - core index']
  #allocation1 [shape = 'u32[144,128]{1,0:T(1,128)}', space=vmem, size = 0x12000, scoped, tag = 'internal scratch']
  %s0 = inlined_call_operand.vmem [shape: f32[2,4,27,2048], index: 0, kind: input, shape index: {}]
  %s1 = inlined_call_operand.vmem [shape: f32[4,4], index: 1, kind: input, shape index: {}]
  %s2 = inlined_call_operand.hbm [shape: f32[2,4,2048], index: 2, kind: output, shape index: {}]
  %s3 = sld [smem:[#allocation0]]
  $region68: #{tpu_custom_call.1} parent=0
    _
  %s5 = ssub.s32 1, %s3
  %s6 = scalar_select 0, %s5, %s3
  $region1: #{tpu_custom_call.1} parent=0
    #allocation2 [shape = 'u8[262144]{0}', space=vmem, size = 0x40000, scoped, tag = 'input window, operand 0']
    #allocation3 [shape = 'u8[2048]{0}', space=smem, size = 0x800, scoped, tag = 'input window, operand 1, single buffered']
    #allocation4 [shape = 's32[2]{0}', space=sflag, size = 0x8, scoped, tag = 'scoped memory for tpu_custom_call.1']
    #allocation5 [shape = 's32[2]{0}', space=sflag, size = 0x8, scoped, tag = 'scoped memory for tpu_custom_call.1']
    #allocation6 [shape = 'u8[8192]{0}', space=vmem, size = 0x2000, scoped, tag = 'output window, operand 0']
    %7 = vsyncpa [#allocation5], 0
    %8 = vsyncpa [#allocation4], 0
    %s9 = scalar_lea.sflag [#allocation4], 1
    %10 = vsyncpa %s9, 0
    loop: start=0, step=1, limit=18
    $region2: #{tpu_custom_call.1} parent=1 // loop_pre_header
      _
    $region3: #{tpu_custom_call.1} parent=1 // loop_header
      %s12 = sphi 0, %s16
      %p13 = scmp.ge.s32.totalorder %s12, 18
      %s19 = sphi 0, %s31
      %s20 = sphi 0, %s27
      %s21 = sphi 0, %s19
      %s22 = sphi 0, %s20
      %s23 = sphi 0, %s21
      %s24 = sphi 0, %s22
      %s36 = sphi 0, %s38
      %s39 = sphi 0, %s36
      %s40 = sphi 0, %s39
      %s56 = sphi 0, %s40
      %s60 = sphi 0, %s60
      %s62 = sphi 0, %s60
      %s63 = sphi 0, %s62
      %s77 = sphi 0, %s63
      %s85 = sphi 0, %s87
      %s88 = sphi 0, %s85
      %s89 = sphi 0, %s88
      %s105 = sphi 0, %s89
    $region4: #{tpu_custom_call.1} parent=1 // loop_header_branch
      %15 = sbr.rel (%p13) target = $region8
    $region5: #{tpu_custom_call.1} parent=1 // loop_body
      %s17 = ssub.s32 %s12, 1
      %s18 = ssub.s32 %s12, 2
      %s25 = sadd.s32 1, %s20
      %p26 = scmp.ge.s32.totalorder %s25, 8
      %s27 = scalar_select %p26, 0, %s25
      %s28 = sadd.s32 1, %s19
      %s29 = scalar_select %p26, %s28, %s19
      %p30 = scmp.ge.s32.totalorder %s29, 2
      %s31 = scalar_select %p30, 0, %s29
      %s32 = ssub.s32 %s19, %s31
      %s33 = ssub.s32 %s20, %s27
      %s34 = sor.u32 %s32, %s33
      %p35 = scmp.eq.s32.totalorder %s34, 0
      %s37 = sadd.s32 %s36, 1
      %s38 = scalar_select %p35, %s36, %s37
      %p41 = pneg %p35
      %p42 = scmp.eq.s32.totalorder %s12, 15
      %p43 = por %p41, %p42
      %p44 = scmp.ne.s32.totalorder %s36, %s39
      %p45 = scmp.eq.s32.totalorder %s12, 0
      %p46 = por %p44, %p45
      %p47 = scmp.ne.s32.totalorder %s36, %s39
      %p48 = scmp.eq.s32.totalorder %s17, 15
      %p49 = por %p47, %p48
      %p50 = scmp.ne.s32.totalorder %s39, %s40
      %p51 = scmp.eq.s32.totalorder %s17, 0
      %p52 = por %p50, %p51
      %p53 = scmp.ne.s32.totalorder %s39, %s40
      %p54 = scmp.eq.s32.totalorder %s18, 15
      %p55 = por %p53, %p54
      %p57 = scmp.ne.s32.totalorder %s40, %s56
      %p58 = scmp.eq.s32.totalorder %s18, 0
      %p59 = por %p57, %p58
      %s61 = sadd.s32 %s60, 1
      %p64 = scmp.eq.s32.totalorder %s12, 15
      %p65 = scmp.ne.s32.totalorder %s60, %s62
      %p66 = scmp.eq.s32.totalorder %s12, 0
      %p67 = por %p65, %p66
      %p68 = scmp.ne.s32.totalorder %s60, %s62
      %p69 = scmp.eq.s32.totalorder %s17, 15
      %p70 = por %p68, %p69
      %p71 = scmp.ne.s32.totalorder %s62, %s63
      %p72 = scmp.eq.s32.totalorder %s17, 0
      %p73 = por %p71, %p72
      %p74 = scmp.ne.s32.totalorder %s62, %s63
      %p75 = scmp.eq.s32.totalorder %s18, 15
      %p76 = por %p74, %p75
      %p78 = scmp.ne.s32.totalorder %s63, %s77
      %p79 = scmp.eq.s32.totalorder %s18, 0
      %p80 = por %p78, %p79
      %s81 = ssub.s32 %s19, %s31
      %s82 = ssub.s32 %s20, %s27
      %s83 = sor.u32 %s81, %s82
      %p84 = scmp.eq.s32.totalorder %s83, 0
      %s86 = sadd.s32 %s85, 1
      %s87 = scalar_select %p84, %s85, %s86
      %p90 = pneg %p84
      %p91 = scmp.eq.s32.totalorder %s12, 15
      %p92 = por %p90, %p91
      %p93 = scmp.ne.s32.totalorder %s85, %s88
      %p94 = scmp.eq.s32.totalorder %s12, 0
      %p95 = por %p93, %p94
      %p96 = scmp.ne.s32.totalorder %s85, %s88
      %p97 = scmp.eq.s32.totalorder %s17, 15
      %p98 = por %p96, %p97
      %p99 = scmp.ne.s32.totalorder %s88, %s89
      %p100 = scmp.eq.s32.totalorder %s17, 0
      %p101 = por %p99, %p100
      %p102 = scmp.ne.s32.totalorder %s88, %s89
      %p103 = scmp.eq.s32.totalorder %s18, 15
      %p104 = por %p102, %p103
      %p106 = scmp.ne.s32.totalorder %s89, %s105
      %p107 = scmp.eq.s32.totalorder %s18, 0
      %p108 = por %p106, %p107
      %p109 = scmp.le.s32.totalorder 1, %s12
      %p110 = scmp.lt.s32.totalorder %s12, 17
      %p111 = pnand %p109, %p110
      %p112 = pneg %p111
      // Predicated region
      $region9: #{tpu_custom_call.1} parent=5 // pred_check
        _
      $region10: #{tpu_custom_call.1} parent=5 // pred_check_branch
        %114 = sbr.rel (%p111) target = $region12
      $region11: #{tpu_custom_call.1} parent=5 // pred_region
        %s115 = ssub.s32 %s12, 1
        // Predicated region
        $region13: #{tpu_custom_call.1} parent=11 // pred_check
          %p116 = pneg %p73
        $region14: #{tpu_custom_call.1} parent=11 // pred_check_branch
          %118 = sbr.rel (%p116) target = $region16
        $region15: #{tpu_custom_call.1} parent=11 // pred_region
          %s120 = ssub.s32 64, 64
          %121 = vsyncadd [#allocation5], %s120
          %s123 = sshll.u32 %s1, 4
          %s124 = int_to_ptr.vmem [resolvable:$true] %s123
          %126 = dma.vmem_to_smem %s124, 64, [#allocation3], [#allocation5]
        $region16: #{tpu_custom_call.1} parent=11 // pred_fallthru
          _
      $region12: #{tpu_custom_call.1} parent=5 // pred_fallthru
        _
      %p127 = scmp.lt.s32.totalorder %s12, 16
      // Predicated region
      $region17: #{tpu_custom_call.1} parent=5 // pred_check
        %p128 = pneg %p127
      $region18: #{tpu_custom_call.1} parent=5 // pred_check_branch
        %130 = sbr.rel (%p128) target = $region20
      $region19: #{tpu_custom_call.1} parent=5 // pred_region
        // Predicated region
        $region21: #{tpu_custom_call.1} parent=19 // pred_check
          %p131 = pneg %p46
        $region22: #{tpu_custom_call.1} parent=19 // pred_check_branch
          %133 = sbr.rel (%p131) target = $region24
        $region23: #{tpu_custom_call.1} parent=19 // pred_region
          %s134 = sand.u32 %s36, 1
          %s135 = sand.u32 %s36, 1
          %s136 = smul.addr %s135, 256
          %s137 = scalar_lea.vmem [#allocation2], %s136
          %s138 = smul.u32 2, %s20
          %s139 = smul.addr %s19, 256
          %s140 = sadd.s32 %s138, %s139
          %s141 = smul.addr %s140, 8
          %s142 = scalar_lea.vmem %s0, %s141
          // Predicated region
          $region25: #{tpu_custom_call.1} parent=23 // pred_check
            _
          $region26: #{tpu_custom_call.1} parent=23 // pred_check_branch
            %144 = sbr.rel (0) target = $region28
          $region27: #{tpu_custom_call.1} parent=23 // pred_region
            // Predicated region
            $region29: #{tpu_custom_call.1} parent=27 // pred_check
              _
            $region30: #{tpu_custom_call.1} parent=27 // pred_check_branch
              %146 = sbr.rel (0) target = $region32
            $region31: #{tpu_custom_call.1} parent=27 // pred_region
              loop: start=0, step=1, limit=1
              $region33: #{tpu_custom_call.1} parent=31 // loop_pre_header
                _
              $region34: #{tpu_custom_call.1} parent=31 // loop_header
                %s148 = sphi 0, %s152
                %p149 = scmp.ge.s32.totalorder %s148, 1
                %s153 = sphi %s142, %s142
                %s154 = sphi %s137, %s137
              $region35: #{tpu_custom_call.1} parent=31 // loop_header_branch
                %151 = sbr.rel (%p149) target = $region39
              $region36: #{tpu_custom_call.1} parent=31 // loop_body
                %v155 = vld [vmem:[%s153] sm:$0xff]
                %156 = vst [vmem:[%s154] sm:$0xff] %v155
                %v157 = vld [vmem:[%s153 + $0x8] sm:$0xff]
                %158 = vst [vmem:[%s154 + $0x8] sm:$0xff] %v157
                %v159 = vld [vmem:[%s153 + $0x80] sm:$0xff]
                %160 = vst [vmem:[%s154 + $0x10] sm:$0xff] %v159
                %v161 = vld [vmem:[%s153 + $0x88] sm:$0xff]
                %162 = vst [vmem:[%s154 + $0x18] sm:$0xff] %v161
                %v163 = vld [vmem:[%s153 + $0x100] sm:$0xff]
                %164 = vst [vmem:[%s154 + $0x20] sm:$0xff] %v163
                %v165 = vld [vmem:[%s153 + $0x108] sm:$0xff]
                %166 = vst [vmem:[%s154 + $0x28] sm:$0xff] %v165
                %v167 = vld [vmem:[%s153 + $0x180] sm:$0xff]
                %168 = vst [vmem:[%s154 + $0x30] sm:$0xff] %v167
                %v169 = vld [vmem:[%s153 + $0x188] sm:$0xff]
                %170 = vst [vmem:[%s154 + $0x38] sm:$0xff] %v169
                %v171 = vld [vmem:[%s153 + $0x200] sm:$0xff]
                %172 = vst [vmem:[%s154 + $0x40] sm:$0xff] %v171
                %v173 = vld [vmem:[%s153 + $0x208] sm:$0xff]
                %174 = vst [vmem:[%s154 + $0x48] sm:$0xff] %v173
                %v175 = vld [vmem:[%s153 + $0x280] sm:$0xff]
                %176 = vst [vmem:[%s154 + $0x50] sm:$0xff] %v175
                %v177 = vld [vmem:[%s153 + $0x288] sm:$0xff]
                %178 = vst [vmem:[%s154 + $0x58] sm:$0xff] %v177
                %v179 = vld [vmem:[%s153 + $0x300] sm:$0xff]
                %180 = vst [vmem:[%s154 + $0x60] sm:$0xff] %v179
                %v181 = vld [vmem:[%s153 + $0x308] sm:$0xff]
                %182 = vst [vmem:[%s154 + $0x68] sm:$0xff] %v181
                %v183 = vld [vmem:[%s153 + $0x380] sm:$0xff]
                %184 = vst [vmem:[%s154 + $0x70] sm:$0xff] %v183
                %v185 = vld [vmem:[%s153 + $0x388] sm:$0xff]
                %186 = vst [vmem:[%s154 + $0x78] sm:$0xff] %v185
                %v187 = vld [vmem:[%s153 + $0x400] sm:$0xff]
                %188 = vst [vmem:[%s154 + $0x80] sm:$0xff] %v187
                %v189 = vld [vmem:[%s153 + $0x408] sm:$0xff]
                %190 = vst [vmem:[%s154 + $0x88] sm:$0xff] %v189
                %v191 = vld [vmem:[%s153 + $0x480] sm:$0xff]
                %192 = vst [vmem:[%s154 + $0x90] sm:$0xff] %v191
                %v193 = vld [vmem:[%s153 + $0x488] sm:$0xff]
                %194 = vst [vmem:[%s154 + $0x98] sm:$0xff] %v193
                %v195 = vld [vmem:[%s153 + $0x500] sm:$0xff]
                %196 = vst [vmem:[%s154 + $0xa0] sm:$0xff] %v195
                %v197 = vld [vmem:[%s153 + $0x508] sm:$0xff]
                %198 = vst [vmem:[%s154 + $0xa8] sm:$0xff] %v197
                %v199 = vld [vmem:[%s153 + $0x580] sm:$0xff]
                %200 = vst [vmem:[%s154 + $0xb0] sm:$0xff] %v199
                %v201 = vld [vmem:[%s153 + $0x588] sm:$0xff]
                %202 = vst [vmem:[%s154 + $0xb8] sm:$0xff] %v201
                %v203 = vld [vmem:[%s153 + $0x600] sm:$0xff]
                %204 = vst [vmem:[%s154 + $0xc0] sm:$0xff] %v203
                %v205 = vld [vmem:[%s153 + $0x608] sm:$0xff]
                %206 = vst [vmem:[%s154 + $0xc8] sm:$0xff] %v205
                %v207 = vld [vmem:[%s153 + $0x680] sm:$0xff]
                %208 = vst [vmem:[%s154 + $0xd0] sm:$0xff] %v207
                %v209 = vld [vmem:[%s153 + $0x688] sm:$0xff]
                %210 = vst [vmem:[%s154 + $0xd8] sm:$0xff] %v209
                %v211 = vld [vmem:[%s153 + $0x700] sm:$0xff]
                %212 = vst [vmem:[%s154 + $0xe0] sm:$0xff] %v211
                %v213 = vld [vmem:[%s153 + $0x708] sm:$0xff]
                %214 = vst [vmem:[%s154 + $0xe8] sm:$0xff] %v213
                %v215 = vld [vmem:[%s153 + $0x780] sm:$0xff]
                %216 = vst [vmem:[%s154 + $0xf0] sm:$0xff] %v215
                %v217 = vld [vmem:[%s153 + $0x788] sm:$0xff]
                %218 = vst [vmem:[%s154 + $0xf8] sm:$0xff] %v217
              $region37: #{tpu_custom_call.1} parent=31 // loop_footer
                %s152 = sadd.s32 1, %s148
              $region38: #{tpu_custom_call.1} parent=31 // loop_footer_branch
                %147 = sbr.rel target = $region34
              $region39: #{tpu_custom_call.1} parent=31 // loop_exit
                _
            $region32: #{tpu_custom_call.1} parent=27 // pred_fallthru
              _
            // Predicated region
            $region40: #{tpu_custom_call.1} parent=27 // pred_check
              _
            $region41: #{tpu_custom_call.1} parent=27 // pred_check_branch
              %220 = sbr.rel target = $region43
            $region42: #{tpu_custom_call.1} parent=27 // pred_region
              _
            $region43: #{tpu_custom_call.1} parent=27 // pred_fallthru
              _
          $region28: #{tpu_custom_call.1} parent=23 // pred_fallthru
            _
          %221 = vnop
        $region24: #{tpu_custom_call.1} parent=19 // pred_fallthru
          _
      $region20: #{tpu_custom_call.1} parent=5 // pred_fallthru
        _
      %p222 = scmp.le.s32.totalorder 1, %s12
      %p223 = scmp.lt.s32.totalorder %s12, 17
      %p224 = pnand %p222, %p223
      %p225 = pneg %p224
      // Predicated region
      $region44: #{tpu_custom_call.1} parent=5 // pred_check
        _
      $region45: #{tpu_custom_call.1} parent=5 // pred_check_branch
        %227 = sbr.rel (%p224) target = $region47
      $region46: #{tpu_custom_call.1} parent=5 // pred_region
        %s228 = ssub.s32 %s12, 1
        %s229 = sand.u32 %s39, 1
        %s230 = sand.u32 %s39, 1
        %s231 = smul.addr %s230, 256
        %s232 = scalar_lea.vmem [#allocation2], %s231
        // Predicated region
        $region48: #{tpu_custom_call.1} parent=46 // pred_check
          %p233 = pneg %p52
        $region49: #{tpu_custom_call.1} parent=46 // pred_check_branch
          %235 = sbr.rel (%p233) target = $region51
        $region50: #{tpu_custom_call.1} parent=46 // pred_region
          _
        $region51: #{tpu_custom_call.1} parent=46 // pred_fallthru
          _
        // Predicated region
        $region52: #{tpu_custom_call.1} parent=46 // pred_check
          %p236 = pneg %p73
        $region53: #{tpu_custom_call.1} parent=46 // pred_check_branch
          %238 = sbr.rel (%p236) target = $region55
        $region54: #{tpu_custom_call.1} parent=46 // pred_region
          %239 = dma.done [#allocation5], 64
        $region55: #{tpu_custom_call.1} parent=46 // pred_fallthru
          _
        %240 = sfence
        %s241 = sand.u32 %s39, 1
        %s242 = sand.u32 %s39, 1
        %s243 = smul.addr %s242, 256
        %s244 = scalar_lea.vmem [#allocation2], %s243
        %p245 = pneg %p52
        %p246 = pneg %p49
        %p247 = pneg %p73
        %p248 = pneg %p70
        %p249 = pneg %p101
        %p250 = pneg %p98
        %s251 = sand.u32 %s88, 1
        %s252 = scalar_lea.sflag [#allocation4], %s251
        %s253 = sand.u32 %s88, 1
        %s254 = smul.addr %s253, 8
        %s255 = scalar_lea.vmem [#allocation6], %s254
        %s256 = smul.u32 2, %s22
        %s257 = smul.u32 2, %s22
        %v258 = vld [vmem:[%s232] sm:$0xff]
        %v259 = vld [vmem:[%s232 + $0x8] sm:$0xff]
        %v260 = vld [vmem:[%s232 + $0x10] sm:$0xff]
        %v261 = vld [vmem:[%s232 + $0x18] sm:$0xff]
        %v262 = vld [vmem:[%s232 + $0x20] sm:$0xff]
        %v263 = vld [vmem:[%s232 + $0x28] sm:$0xff]
        %v264 = vld [vmem:[%s232 + $0x30] sm:$0x7]
        %v265 = vld [vmem:[%s232 + $0x38] sm:$0x7]
        %v266 = vadd.f32 %v258, %v260
        %v267 = vadd.f32 %v266, %v262
        %vm268 = vcmask 1042432
        %v269 = vsel %vm268, %v264, 0.0
        %v270 = vadd.f32 %v267, %v269
        %v271 = vrot.slane %v270, 4
        %v272 = vadd.f32 %v270, %v271
        %v273 = vrot.slane %v272, 2
        %v274 = vadd.f32 %v272, %v273
        %v275 = vrot.slane %v274, 1
        %v276 = vadd.f32 %v274, %v275
        %v277 = vadd.f32 %v259, %v261
        %v278 = vadd.f32 %v277, %v263
        %v279 = vsel %vm268, %v265, 0.0
        %v280 = vadd.f32 %v278, %v279
        %v281 = vrot.slane %v280, 4
        %v282 = vadd.f32 %v280, %v281
        %v283 = vrot.slane %v282, 2
        %v284 = vadd.f32 %v282, %v283
        %v285 = vrot.slane %v284, 1
        %v286 = vadd.f32 %v284, %v285
        %v287 = vmul.f32 %v276, 0.037037037
        %v288 = vmul.f32 %v286, 0.037037037
        %s289 = scalar_lea.vmem %s232, 64 [#allocation2]
        %v290 = vld [vmem:[%s289] sm:$0xff]
        %v291 = vld [vmem:[%s289 + $0x8] sm:$0xff]
        %v292 = vld [vmem:[%s289 + $0x10] sm:$0xff]
        %v293 = vld [vmem:[%s289 + $0x18] sm:$0xff]
        %v294 = vld [vmem:[%s289 + $0x20] sm:$0xff]
        %v295 = vld [vmem:[%s289 + $0x28] sm:$0xff]
        %v296 = vld [vmem:[%s289 + $0x30] sm:$0x7]
        %v297 = vld [vmem:[%s289 + $0x38] sm:$0x7]
        %v298 = vadd.f32 %v290, %v292
        %v299 = vadd.f32 %v298, %v294
        %v300 = vsel %vm268, %v296, 0.0
        %v301 = vadd.f32 %v299, %v300
        %v302 = vrot.slane %v301, 4
        %v303 = vadd.f32 %v301, %v302
        %v304 = vrot.slane %v303, 2
        %v305 = vadd.f32 %v303, %v304
        %v306 = vrot.slane %v305, 1
        %v307 = vadd.f32 %v305, %v306
        %v308 = vadd.f32 %v291, %v293
        %v309 = vadd.f32 %v308, %v295
        %v310 = vsel %vm268, %v297, 0.0
        %v311 = vadd.f32 %v309, %v310
        %v312 = vrot.slane %v311, 4
        %v313 = vadd.f32 %v311, %v312
        %v314 = vrot.slane %v313, 2
        %v315 = vadd.f32 %v313, %v314
        %v316 = vrot.slane %v315, 1
        %v317 = vadd.f32 %v315, %v316
        %v318 = vmul.f32 %v307, 0.037037037
        %v319 = vmul.f32 %v317, 0.037037037
        %s320 = scalar_lea.vmem %s232, 128 [#allocation2]
        %v321 = vld [vmem:[%s320] sm:$0xff]
        %v322 = vld [vmem:[%s320 + $0x8] sm:$0xff]
        %v323 = vld [vmem:[%s320 + $0x10] sm:$0xff]
        %v324 = vld [vmem:[%s320 + $0x18] sm:$0xff]
        %v325 = vld [vmem:[%s320 + $0x20] sm:$0xff]
        %v326 = vld [vmem:[%s320 + $0x28] sm:$0xff]
        %v327 = vld [vmem:[%s320 + $0x30] sm:$0x7]
        %v328 = vld [vmem:[%s320 + $0x38] sm:$0x7]
        %v329 = vadd.f32 %v321, %v323
        %v330 = vadd.f32 %v329, %v325
        %v331 = vsel %vm268, %v327, 0.0
        %v332 = vadd.f32 %v330, %v331
        %v333 = vrot.slane %v332, 4
        %v334 = vadd.f32 %v332, %v333
        %v335 = vrot.slane %v334, 2
        %v336 = vadd.f32 %v334, %v335
        %v337 = vrot.slane %v336, 1
        %v338 = vadd.f32 %v336, %v337
        %v339 = vadd.f32 %v322, %v324
        %v340 = vadd.f32 %v339, %v326
        %v341 = vsel %vm268, %v328, 0.0
        %v342 = vadd.f32 %v340, %v341
        %v343 = vrot.slane %v342, 4
        %v344 = vadd.f32 %v342, %v343
        %v345 = vrot.slane %v344, 2
        %v346 = vadd.f32 %v344, %v345
        %v347 = vrot.slane %v346, 1
        %v348 = vadd.f32 %v346, %v347
        %v349 = vmul.f32 %v338, 0.037037037
        %v350 = vmul.f32 %v348, 0.037037037
        %s351 = scalar_lea.vmem %s232, 192 [#allocation2]
        %v352 = vld [vmem:[%s351] sm:$0xff]
        %v353 = vld [vmem:[%s351 + $0x8] sm:$0xff]
        %v354 = vld [vmem:[%s351 + $0x10] sm:$0xff]
        %v355 = vld [vmem:[%s351 + $0x18] sm:$0xff]
        %v356 = vld [vmem:[%s351 + $0x20] sm:$0xff]
        %v357 = vld [vmem:[%s351 + $0x28] sm:$0xff]
        %v358 = vld [vmem:[%s351 + $0x30] sm:$0x7]
        %v359 = vld [vmem:[%s351 + $0x38] sm:$0x7]
        %v360 = vadd.f32 %v352, %v354
        %v361 = vadd.f32 %v360, %v356
        %v362 = vsel %vm268, %v358, 0.0
        %v363 = vadd.f32 %v361, %v362
        %v364 = vrot.slane %v363, 4
        %v365 = vadd.f32 %v363, %v364
        %v366 = vrot.slane %v365, 2
        %v367 = vadd.f32 %v365, %v366
        %v368 = vrot.slane %v367, 1
        %v369 = vadd.f32 %v367, %v368
        %v370 = vadd.f32 %v353, %v355
        %v371 = vadd.f32 %v370, %v357
        %v372 = vsel %vm268, %v359, 0.0
        %v373 = vadd.f32 %v371, %v372
        %v374 = vrot.slane %v373, 4
        %v375 = vadd.f32 %v373, %v374
        %v376 = vrot.slane %v375, 2
        %v377 = vadd.f32 %v375, %v376
        %v378 = vrot.slane %v377, 1
        %v379 = vadd.f32 %v377, %v378
        %v380 = vmul.f32 %v369, 0.037037037
        %v381 = vmul.f32 %v379, 0.037037037
        %v382 = vadd.f32 %v258, %v290
        %v383 = vadd.f32 %v259, %v291
        %v384 = vadd.f32 %v260, %v292
        %v385 = vadd.f32 %v261, %v293
        %v386 = vadd.f32 %v262, %v294
        %v387 = vadd.f32 %v263, %v295
        %v388 = vadd.f32 %v264, %v296
        %v389 = vadd.f32 %v265, %v297
        %v390 = vadd.f32 %v382, %v321
        %v391 = vadd.f32 %v383, %v322
        %v392 = vadd.f32 %v384, %v323
        %v393 = vadd.f32 %v385, %v324
        %v394 = vadd.f32 %v386, %v325
        %v395 = vadd.f32 %v387, %v326
        %v396 = vadd.f32 %v388, %v327
        %v397 = vadd.f32 %v389, %v328
        %v398 = vadd.f32 %v390, %v352
        %v399 = vadd.f32 %v391, %v353
        %v400 = vadd.f32 %v392, %v354
        %v401 = vadd.f32 %v393, %v355
        %v402 = vadd.f32 %v394, %v356
        %v403 = vadd.f32 %v395, %v357
        %v404 = vadd.f32 %v396, %v358
        %v405 = vadd.f32 %v397, %v359
        %v406 = vmul.f32 %v398, 0.25
        %v407 = vmul.f32 %v399, 0.25
        %v408 = vmul.f32 %v400, 0.25
        %v409 = vmul.f32 %v401, 0.25
        %v410 = vmul.f32 %v402, 0.25
        %v411 = vmul.f32 %v403, 0.25
        %v412 = vmul.f32 %v404, 0.25
        %v413 = vmul.f32 %v405, 0.25
        %v414 = vmul.f32 %v287, %v258
        %v415 = vmul.f32 %v288, %v259
        %v416 = vmul.f32 %v287, %v260
        %v417 = vmul.f32 %v288, %v261
        %v418 = vmul.f32 %v287, %v262
        %v419 = vmul.f32 %v288, %v263
        %v420 = vmul.f32 %v287, %v264
        %v421 = vmul.f32 %v288, %v265
        %v422 = vmul.f32 %v287, %v287
        %v423 = vmul.f32 %v288, %v288
        %v424 = vmul.f32 %v318, %v290
        %v425 = vmul.f32 %v319, %v291
        %v426 = vmul.f32 %v318, %v292
        %v427 = vmul.f32 %v319, %v293
        %v428 = vmul.f32 %v318, %v294
        %v429 = vmul.f32 %v319, %v295
        %v430 = vmul.f32 %v318, %v296
        %v431 = vmul.f32 %v319, %v297
        %v432 = vadd.f32 %v414, %v424
        %v433 = vadd.f32 %v415, %v425
        %v434 = vadd.f32 %v416, %v426
        %v435 = vadd.f32 %v417, %v427
        %v436 = vadd.f32 %v418, %v428
        %v437 = vadd.f32 %v419, %v429
        %v438 = vadd.f32 %v420, %v430
        %v439 = vadd.f32 %v421, %v431
        %v440 = vmul.f32 %v318, %v318
        %v441 = vmul.f32 %v319, %v319
        %v442 = vadd.f32 %v422, %v440
        %v443 = vadd.f32 %v423, %v441
        %v444 = vmul.f32 %v349, %v321
        %v445 = vmul.f32 %v350, %v322
        %v446 = vmul.f32 %v349, %v323
        %v447 = vmul.f32 %v350, %v324
        %v448 = vmul.f32 %v349, %v325
        %v449 = vmul.f32 %v350, %v326
        %v450 = vmul.f32 %v349, %v327
        %v451 = vmul.f32 %v350, %v328
        %v452 = vadd.f32 %v432, %v444
        %v453 = vadd.f32 %v433, %v445
        %v454 = vadd.f32 %v434, %v446
        %v455 = vadd.f32 %v435, %v447
        %v456 = vadd.f32 %v436, %v448
        %v457 = vadd.f32 %v437, %v449
        %v458 = vadd.f32 %v438, %v450
        %v459 = vadd.f32 %v439, %v451
        %v460 = vmul.f32 %v349, %v349
        %v461 = vmul.f32 %v350, %v350
        %v462 = vadd.f32 %v442, %v460
        %v463 = vadd.f32 %v443, %v461
        %v464 = vmul.f32 %v380, %v352
        %v465 = vmul.f32 %v381, %v353
        %v466 = vmul.f32 %v380, %v354
        %v467 = vmul.f32 %v381, %v355
        %v468 = vmul.f32 %v380, %v356
        %v469 = vmul.f32 %v381, %v357
        %v470 = vmul.f32 %v380, %v358
        %v471 = vmul.f32 %v381, %v359
        %v472 = vadd.f32 %v452, %v464
        %v473 = vadd.f32 %v453, %v465
        %v474 = vadd.f32 %v454, %v466
        %v475 = vadd.f32 %v455, %v467
        %v476 = vadd.f32 %v456, %v468
        %v477 = vadd.f32 %v457, %v469
        %v478 = vadd.f32 %v458, %v470
        %v479 = vadd.f32 %v459, %v471
        %v480 = vmul.f32 %v380, %v380
        %v481 = vmul.f32 %v381, %v381
        %v482 = vadd.f32 %v462, %v480
        %v483 = vadd.f32 %v463, %v481
        %v484 = vmul.f32 %v406, %v472
        %v485 = vmul.f32 %v407, %v473
        %v486 = vmul.f32 %v408, %v474
        %v487 = vmul.f32 %v409, %v475
        %v488 = vmul.f32 %v410, %v476
        %v489 = vmul.f32 %v411, %v477
        %v490 = vmul.f32 %v412, %v478
        %v491 = vmul.f32 %v413, %v479
        %v492 = vmul.f32 %v482, 3.0
        %v493 = vmul.f32 %v483, 3.0
        %v494 = vmul.f32 %v492, %v406
        %v495 = vmul.f32 %v493, %v407
        %v496 = vmul.f32 %v492, %v408
        %v497 = vmul.f32 %v493, %v409
        %v498 = vmul.f32 %v492, %v410
        %v499 = vmul.f32 %v493, %v411
        %v500 = vmul.f32 %v492, %v412
        %v501 = vmul.f32 %v493, %v413
        %v502 = vadd.f32 %v494, 1e-06
        %v503 = vadd.f32 %v495, 1e-06
        %v504 = vadd.f32 %v496, 1e-06
        %v505 = vadd.f32 %v497, 1e-06
        %v506 = vadd.f32 %v498, 1e-06
        %v507 = vadd.f32 %v499, 1e-06
        %v508 = vadd.f32 %v500, 1e-06
        %v509 = vadd.f32 %v501, 1e-06
        %v510 = vrcp.pop %v502
        %v511 = vrcp.pop %v503
        %v512 = vrcp.pop %v504
        %v513 = vrcp.pop %v505
        %v514 = vrcp.pop %v506
        %v515 = vrcp.pop %v507
        %v516 = vrcp.pop %v508
        %v517 = vrcp.pop %v509
        %v518 = vmul.f32 %v502, %v510
        %v519 = vmul.f32 %v503, %v511
        %v520 = vmul.f32 %v504, %v512
        %v521 = vmul.f32 %v505, %v513
        %v522 = vmul.f32 %v506, %v514
        %v523 = vmul.f32 %v507, %v515
        %v524 = vmul.f32 %v508, %v516
        %v525 = vmul.f32 %v509, %v517
        %v526 = vsub.f32 2.0, %v518
        %v527 = vsub.f32 2.0, %v519
        %v528 = vsub.f32 2.0, %v520
        %v529 = vsub.f32 2.0, %v521
        %v530 = vsub.f32 2.0, %v522
        %v531 = vsub.f32 2.0, %v523
        %v532 = vsub.f32 2.0, %v524
        %v533 = vsub.f32 2.0, %v525
        %v534 = vmul.f32 %v510, %v526
        %v535 = vmul.f32 %v511, %v527
        %v536 = vmul.f32 %v512, %v528
        %v537 = vmul.f32 %v513, %v529
        %v538 = vmul.f32 %v514, %v530
        %v539 = vmul.f32 %v515, %v531
        %v540 = vmul.f32 %v516, %v532
        %v541 = vmul.f32 %v517, %v533
        %v542 = vmul.f32 %v484, %v534
        %v543 = vmul.f32 %v485, %v535
        %v544 = vmul.f32 %v486, %v536
        %v545 = vmul.f32 %v487, %v537
        %v546 = vmul.f32 %v488, %v538
        %v547 = vmul.f32 %v489, %v539
        %v548 = vmul.f32 %v490, %v540
        %v549 = vmul.f32 %v491, %v541
        %v550 = vmul.f32 %v542, %v542
        %v551 = vmul.f32 %v543, %v543
        %v552 = vmul.f32 %v544, %v544
        %v553 = vmul.f32 %v545, %v545
        %v554 = vmul.f32 %v546, %v546
        %v555 = vmul.f32 %v547, %v547
        %v556 = vmul.f32 %v548, %v548
        %v557 = vmul.f32 %v549, %v549
        %v558 = vadd.f32 %v550, %v552
        %v559 = vadd.f32 %v558, %v554
        %v560 = vsel %vm268, %v556, 0.0
        %v561 = vadd.f32 %v559, %v560
        %v562 = vrot.slane %v561, 4
        %v563 = vadd.f32 %v561, %v562
        %v564 = vrot.slane %v563, 2
        %v565 = vadd.f32 %v563, %v564
        %v566 = vrot.slane %v565, 1
        %v567 = vadd.f32 %v565, %v566
        %v568 = vadd.f32 %v551, %v553
        %v569 = vadd.f32 %v568, %v555
        %v570 = vsel %vm268, %v557, 0.0
        %v571 = vadd.f32 %v569, %v570
        %v572 = vrot.slane %v571, 4
        %v573 = vadd.f32 %v571, %v572
        %v574 = vrot.slane %v573, 2
        %v575 = vadd.f32 %v573, %v574
        %v576 = vrot.slane %v575, 1
        %v577 = vadd.f32 %v575, %v576
        %v578 = vmul.f32 %v567, 3.0
        %v579 = vmul.f32 %v577, 3.0
        %v580 = vmul.f32 %v258, %v542
        %v581 = vmul.f32 %v259, %v543
        %v582 = vmul.f32 %v260, %v544
        %v583 = vmul.f32 %v261, %v545
        %v584 = vmul.f32 %v262, %v546
        %v585 = vmul.f32 %v263, %v547
        %v586 = vmul.f32 %v264, %v548
        %v587 = vmul.f32 %v265, %v549
        %v588 = vadd.f32 %v580, %v582
        %v589 = vadd.f32 %v588, %v584
        %v590 = vsel %vm268, %v586, 0.0
        %v591 = vadd.f32 %v589, %v590
        %v592 = vrot.slane %v591, 4
        %v593 = vadd.f32 %v591, %v592
        %v594 = vrot.slane %v593, 2
        %v595 = vadd.f32 %v593, %v594
        %v596 = vrot.slane %v595, 1
        %v597 = vadd.f32 %v595, %v596
        %v598 = vadd.f32 %v581, %v583
        %v599 = vadd.f32 %v598, %v585
        %v600 = vsel %vm268, %v587, 0.0
        %v601 = vadd.f32 %v599, %v600
        %v602 = vrot.slane %v601, 4
        %v603 = vadd.f32 %v601, %v602
        %v604 = vrot.slane %v603, 2
        %v605 = vadd.f32 %v603, %v604
        %v606 = vrot.slane %v605, 1
        %v607 = vadd.f32 %v605, %v606
        %v608 = vmul.f32 %v287, %v597
        %v609 = vmul.f32 %v288, %v607
        %v610 = vmul.f32 %v287, %v578
        %v611 = vmul.f32 %v288, %v579
        %v612 = vadd.f32 %v610, 1e-06
        %v613 = vadd.f32 %v611, 1e-06
        %v614 = vrcp.pop %v612
        %v615 = vrcp.pop %v613
        %v616 = vmul.f32 %v612, %v614
        %v617 = vmul.f32 %v613, %v615
        %v618 = vsub.f32 2.0, %v616
        %v619 = vsub.f32 2.0, %v617
        %v620 = vmul.f32 %v614, %v618
        %v621 = vmul.f32 %v615, %v619
        %v622 = vmul.f32 %v608, %v620
        %v623 = vmul.f32 %v609, %v621
        %v624 = vmul.f32 %v290, %v542
        %v625 = vmul.f32 %v291, %v543
        %v626 = vmul.f32 %v292, %v544
        %v627 = vmul.f32 %v293, %v545
        %v628 = vmul.f32 %v294, %v546
        %v629 = vmul.f32 %v295, %v547
        %v630 = vmul.f32 %v296, %v548
        %v631 = vmul.f32 %v297, %v549
        %v632 = vadd.f32 %v624, %v626
        %v633 = vadd.f32 %v632, %v628
        %v634 = vsel %vm268, %v630, 0.0
        %v635 = vadd.f32 %v633, %v634
        %v636 = vrot.slane %v635, 4
        %v637 = vadd.f32 %v635, %v636
        %v638 = vrot.slane %v637, 2
        %v639 = vadd.f32 %v637, %v638
        %v640 = vrot.slane %v639, 1
        %v641 = vadd.f32 %v639, %v640
        %v642 = vadd.f32 %v625, %v627
        %v643 = vadd.f32 %v642, %v629
        %v644 = vsel %vm268, %v631, 0.0
        %v645 = vadd.f32 %v643, %v644
        %v646 = vrot.slane %v645, 4
        %v647 = vadd.f32 %v645, %v646
        %v648 = vrot.slane %v647, 2
        %v649 = vadd.f32 %v647, %v648
        %v650 = vrot.slane %v649, 1
        %v651 = vadd.f32 %v649, %v650
        %v652 = vmul.f32 %v318, %v641
        %v653 = vmul.f32 %v319, %v651
        %v654 = vmul.f32 %v318, %v578
        %v655 = vmul.f32 %v319, %v579
        %v656 = vadd.f32 %v654, 1e-06
        %v657 = vadd.f32 %v655, 1e-06
        %v658 = vrcp.pop %v656
        %v659 = vrcp.pop %v657
        %v660 = vmul.f32 %v656, %v658
        %v661 = vmul.f32 %v657, %v659
        %v662 = vsub.f32 2.0, %v660
        %v663 = vsub.f32 2.0, %v661
        %v664 = vmul.f32 %v658, %v662
        %v665 = vmul.f32 %v659, %v663
        %v666 = vmul.f32 %v652, %v664
        %v667 = vmul.f32 %v653, %v665
        %v668 = vmul.f32 %v321, %v542
        %v669 = vmul.f32 %v322, %v543
        %v670 = vmul.f32 %v323, %v544
        %v671 = vmul.f32 %v324, %v545
        %v672 = vmul.f32 %v325, %v546
        %v673 = vmul.f32 %v326, %v547
        %v674 = vmul.f32 %v327, %v548
        %v675 = vmul.f32 %v328, %v549
        %v676 = vadd.f32 %v668, %v670
        %v677 = vadd.f32 %v676, %v672
        %v678 = vsel %vm268, %v674, 0.0
        %v679 = vadd.f32 %v677, %v678
        %v680 = vrot.slane %v679, 4
        %v681 = vadd.f32 %v679, %v680
        %v682 = vrot.slane %v681, 2
        %v683 = vadd.f32 %v681, %v682
        %v684 = vrot.slane %v683, 1
        %v685 = vadd.f32 %v683, %v684
        %v686 = vadd.f32 %v669, %v671
        %v687 = vadd.f32 %v686, %v673
        %v688 = vsel %vm268, %v675, 0.0
        %v689 = vadd.f32 %v687, %v688
        %v690 = vrot.slane %v689, 4
        %v691 = vadd.f32 %v689, %v690
        %v692 = vrot.slane %v691, 2
        %v693 = vadd.f32 %v691, %v692
        %v694 = vrot.slane %v693, 1
        %v695 = vadd.f32 %v693, %v694
        %v696 = vmul.f32 %v349, %v685
        %v697 = vmul.f32 %v350, %v695
        %v698 = vmul.f32 %v349, %v578
        %v699 = vmul.f32 %v350, %v579
        %v700 = vadd.f32 %v698, 1e-06
        %v701 = vadd.f32 %v699, 1e-06
        %v702 = vrcp.pop %v700
        %v703 = vrcp.pop %v701
        %v704 = vmul.f32 %v700, %v702
        %v705 = vmul.f32 %v701, %v703
        %v706 = vsub.f32 2.0, %v704
        %v707 = vsub.f32 2.0, %v705
        %v708 = vmul.f32 %v702, %v706
        %v709 = vmul.f32 %v703, %v707
        %v710 = vmul.f32 %v696, %v708
        %v711 = vmul.f32 %v697, %v709
        %v712 = vmul.f32 %v352, %v542
        %v713 = vmul.f32 %v353, %v543
        %v714 = vmul.f32 %v354, %v544
        %v715 = vmul.f32 %v355, %v545
        %v716 = vmul.f32 %v356, %v546
        %v717 = vmul.f32 %v357, %v547
        %v718 = vmul.f32 %v358, %v548
        %v719 = vmul.f32 %v359, %v549
        %v720 = vadd.f32 %v712, %v714
        %v721 = vadd.f32 %v720, %v716
        %v722 = vsel %vm268, %v718, 0.0
        %v723 = vadd.f32 %v721, %v722
        %v724 = vrot.slane %v723, 4
        %v725 = vadd.f32 %v723, %v724
        %v726 = vrot.slane %v725, 2
        %v727 = vadd.f32 %v725, %v726
        %v728 = vrot.slane %v727, 1
        %v729 = vadd.f32 %v727, %v728
        %v730 = vadd.f32 %v713, %v715
        %v731 = vadd.f32 %v730, %v717
        %v732 = vsel %vm268, %v719, 0.0
        %v733 = vadd.f32 %v731, %v732
        %v734 = vrot.slane %v733, 4
        %v735 = vadd.f32 %v733, %v734
        %v736 = vrot.slane %v735, 2
        %v737 = vadd.f32 %v735, %v736
        %v738 = vrot.slane %v737, 1
        %v739 = vadd.f32 %v737, %v738
        %v740 = vmul.f32 %v380, %v729
        %v741 = vmul.f32 %v381, %v739
        %v742 = vmul.f32 %v380, %v578
        %v743 = vmul.f32 %v381, %v579
        %v744 = vadd.f32 %v742, 1e-06
        %v745 = vadd.f32 %v743, 1e-06
        %v746 = vrcp.pop %v744
        %v747 = vrcp.pop %v745
        %v748 = vmul.f32 %v744, %v746
        %v749 = vmul.f32 %v745, %v747
        %v750 = vsub.f32 2.0, %v748
        %v751 = vsub.f32 2.0, %v749
        %v752 = vmul.f32 %v746, %v750
        %v753 = vmul.f32 %v747, %v751
        %v754 = vmul.f32 %v740, %v752
        %v755 = vmul.f32 %v741, %v753
        %v756 = vmul.f32 %v622, %v258
        %v757 = vmul.f32 %v623, %v259
        %v758 = vmul.f32 %v622, %v260
        %v759 = vmul.f32 %v623, %v261
        %v760 = vmul.f32 %v622, %v262
        %v761 = vmul.f32 %v623, %v263
        %v762 = vmul.f32 %v622, %v264
        %v763 = vmul.f32 %v623, %v265
        %v764 = vmul.f32 %v622, %v622
        %v765 = vmul.f32 %v623, %v623
        %v766 = vmul.f32 %v666, %v290
        %v767 = vmul.f32 %v667, %v291
        %v768 = vmul.f32 %v666, %v292
        %v769 = vmul.f32 %v667, %v293
        %v770 = vmul.f32 %v666, %v294
        %v771 = vmul.f32 %v667, %v295
        %v772 = vmul.f32 %v666, %v296
        %v773 = vmul.f32 %v667, %v297
        %v774 = vadd.f32 %v756, %v766
        %v775 = vadd.f32 %v757, %v767
        %v776 = vadd.f32 %v758, %v768
        %v777 = vadd.f32 %v759, %v769
        %v778 = vadd.f32 %v760, %v770
        %v779 = vadd.f32 %v761, %v771
        %v780 = vadd.f32 %v762, %v772
        %v781 = vadd.f32 %v763, %v773
        %v782 = vmul.f32 %v666, %v666
        %v783 = vmul.f32 %v667, %v667
        %v784 = vadd.f32 %v764, %v782
        %v785 = vadd.f32 %v765, %v783
        %v786 = vmul.f32 %v710, %v321
        %v787 = vmul.f32 %v711, %v322
        %v788 = vmul.f32 %v710, %v323
        %v789 = vmul.f32 %v711, %v324
        %v790 = vmul.f32 %v710, %v325
        %v791 = vmul.f32 %v711, %v326
        %v792 = vmul.f32 %v710, %v327
        %v793 = vmul.f32 %v711, %v328
        %v794 = vadd.f32 %v774, %v786
        %v795 = vadd.f32 %v775, %v787
        %v796 = vadd.f32 %v776, %v788
        %v797 = vadd.f32 %v777, %v789
        %v798 = vadd.f32 %v778, %v790
        %v799 = vadd.f32 %v779, %v791
        %v800 = vadd.f32 %v780, %v792
        %v801 = vadd.f32 %v781, %v793
        %v802 = vmul.f32 %v710, %v710
        %v803 = vmul.f32 %v711, %v711
        %v804 = vadd.f32 %v784, %v802
        %v805 = vadd.f32 %v785, %v803
        %v806 = vmul.f32 %v754, %v352
        %v807 = vmul.f32 %v755, %v353
        %v808 = vmul.f32 %v754, %v354
        %v809 = vmul.f32 %v755, %v355
        %v810 = vmul.f32 %v754, %v356
        %v811 = vmul.f32 %v755, %v357
        %v812 = vmul.f32 %v754, %v358
        %v813 = vmul.f32 %v755, %v359
        %v814 = vadd.f32 %v794, %v806
        %v815 = vadd.f32 %v795, %v807
        %v816 = vadd.f32 %v796, %v808
        %v817 = vadd.f32 %v797, %v809
        %v818 = vadd.f32 %v798, %v810
        %v819 = vadd.f32 %v799, %v811
        %v820 = vadd.f32 %v800, %v812
        %v821 = vadd.f32 %v801, %v813
        %v822 = vmul.f32 %v754, %v754
        %v823 = vmul.f32 %v755, %v755
        %v824 = vadd.f32 %v804, %v822
        %v825 = vadd.f32 %v805, %v823
        %v826 = vmul.f32 %v542, %v814
        %v827 = vmul.f32 %v543, %v815
        %v828 = vmul.f32 %v544, %v816
        %v829 = vmul.f32 %v545, %v817
        %v830 = vmul.f32 %v546, %v818
        %v831 = vmul.f32 %v547, %v819
        %v832 = vmul.f32 %v548, %v820
        %v833 = vmul.f32 %v549, %v821
        %v834 = vmul.f32 %v824, 3.0
        %v835 = vmul.f32 %v825, 3.0
        %v836 = vmul.f32 %v834, %v542
        %v837 = vmul.f32 %v835, %v543
        %v838 = vmul.f32 %v834, %v544
        %v839 = vmul.f32 %v835, %v545
        %v840 = vmul.f32 %v834, %v546
        %v841 = vmul.f32 %v835, %v547
        %v842 = vmul.f32 %v834, %v548
        %v843 = vmul.f32 %v835, %v549
        %v844 = vadd.f32 %v836, 1e-06
        %v845 = vadd.f32 %v837, 1e-06
        %v846 = vadd.f32 %v838, 1e-06
        %v847 = vadd.f32 %v839, 1e-06
        %v848 = vadd.f32 %v840, 1e-06
        %v849 = vadd.f32 %v841, 1e-06
        %v850 = vadd.f32 %v842, 1e-06
        %v851 = vadd.f32 %v843, 1e-06
        %v852 = vrcp.pop %v844
        %v853 = vrcp.pop %v845
        %v854 = vrcp.pop %v846
        %v855 = vrcp.pop %v847
        %v856 = vrcp.pop %v848
        %v857 = vrcp.pop %v849
        %v858 = vrcp.pop %v850
        %v859 = vrcp.pop %v851
        %v860 = vmul.f32 %v844, %v852
        %v861 = vmul.f32 %v845, %v853
        %v862 = vmul.f32 %v846, %v854
        %v863 = vmul.f32 %v847, %v855
        %v864 = vmul.f32 %v848, %v856
        %v865 = vmul.f32 %v849, %v857
        %v866 = vmul.f32 %v850, %v858
        %v867 = vmul.f32 %v851, %v859
        %v868 = vsub.f32 2.0, %v860
        %v869 = vsub.f32 2.0, %v861
        %v870 = vsub.f32 2.0, %v862
        %v871 = vsub.f32 2.0, %v863
        %v872 = vsub.f32 2.0, %v864
        %v873 = vsub.f32 2.0, %v865
        %v874 = vsub.f32 2.0, %v866
        %v875 = vsub.f32 2.0, %v867
        %v876 = vmul.f32 %v852, %v868
        %v877 = vmul.f32 %v853, %v869
        %v878 = vmul.f32 %v854, %v870
        %v879 = vmul.f32 %v855, %v871
        %v880 = vmul.f32 %v856, %v872
        %v881 = vmul.f32 %v857, %v873
        %v882 = vmul.f32 %v858, %v874
        %v883 = vmul.f32 %v859, %v875
        %v884 = vmul.f32 %v826, %v876
        %v885 = vmul.f32 %v827, %v877
        %v886 = vmul.f32 %v828, %v878
        %v887 = vmul.f32 %v829, %v879
        %v888 = vmul.f32 %v830, %v880
        %v889 = vmul.f32 %v831, %v881
        %v890 = vmul.f32 %v832, %v882
        %v891 = vmul.f32 %v833, %v883
        %v892 = vmul.f32 %v884, %v884
        %v893 = vmul.f32 %v885, %v885
        %v894 = vmul.f32 %v886, %v886
        %v895 = vmul.f32 %v887, %v887
        %v896 = vmul.f32 %v888, %v888
        %v897 = vmul.f32 %v889, %v889
        %v898 = vmul.f32 %v890, %v890
        %v899 = vmul.f32 %v891, %v891
        %v900 = vadd.f32 %v892, %v894
        %v901 = vadd.f32 %v900, %v896
        %v902 = vsel %vm268, %v898, 0.0
        %v903 = vadd.f32 %v901, %v902
        %v904 = vrot.slane %v903, 4
        %v905 = vadd.f32 %v903, %v904
        %v906 = vrot.slane %v905, 2
        %v907 = vadd.f32 %v905, %v906
        %v908 = vrot.slane %v907, 1
        %v909 = vadd.f32 %v907, %v908
        %v910 = vadd.f32 %v893, %v895
        %v911 = vadd.f32 %v910, %v897
        %v912 = vsel %vm268, %v899, 0.0
        %v913 = vadd.f32 %v911, %v912
        %v914 = vrot.slane %v913, 4
        %v915 = vadd.f32 %v913, %v914
        %v916 = vrot.slane %v915, 2
        %v917 = vadd.f32 %v915, %v916
        %v918 = vrot.slane %v917, 1
        %v919 = vadd.f32 %v917, %v918
        %v920 = vmul.f32 %v909, 3.0
        %v921 = vmul.f32 %v919, 3.0
        %v922 = vmul.f32 %v258, %v884
        %v923 = vmul.f32 %v259, %v885
        %v924 = vmul.f32 %v260, %v886
        %v925 = vmul.f32 %v261, %v887
        %v926 = vmul.f32 %v262, %v888
        %v927 = vmul.f32 %v263, %v889
        %v928 = vmul.f32 %v264, %v890
        %v929 = vmul.f32 %v265, %v891
        %v930 = vadd.f32 %v922, %v924
        %v931 = vadd.f32 %v930, %v926
        %v932 = vsel %vm268, %v928, 0.0
        %v933 = vadd.f32 %v931, %v932
        %v934 = vrot.slane %v933, 4
        %v935 = vadd.f32 %v933, %v934
        %v936 = vrot.slane %v935, 2
        %v937 = vadd.f32 %v935, %v936
        %v938 = vrot.slane %v937, 1
        %v939 = vadd.f32 %v937, %v938
        %v940 = vadd.f32 %v923, %v925
        %v941 = vadd.f32 %v940, %v927
        %v942 = vsel %vm268, %v929, 0.0
        %v943 = vadd.f32 %v941, %v942
        %v944 = vrot.slane %v943, 4
        %v945 = vadd.f32 %v943, %v944
        %v946 = vrot.slane %v945, 2
        %v947 = vadd.f32 %v945, %v946
        %v948 = vrot.slane %v947, 1
        %v949 = vadd.f32 %v947, %v948
        %v950 = vmul.f32 %v622, %v939
        %v951 = vmul.f32 %v623, %v949
        %v952 = vmul.f32 %v622, %v920
        %v953 = vmul.f32 %v623, %v921
        %v954 = vadd.f32 %v952, 1e-06
        %v955 = vadd.f32 %v953, 1e-06
        %v956 = vrcp.pop %v954
        %v957 = vrcp.pop %v955
        %v958 = vmul.f32 %v954, %v956
        %v959 = vmul.f32 %v955, %v957
        %v960 = vsub.f32 2.0, %v958
        %v961 = vsub.f32 2.0, %v959
        %v962 = vmul.f32 %v956, %v960
        %v963 = vmul.f32 %v957, %v961
        %v964 = vmul.f32 %v950, %v962
        %v965 = vmul.f32 %v951, %v963
        %v966 = vmul.f32 %v290, %v884
        %v967 = vmul.f32 %v291, %v885
        %v968 = vmul.f32 %v292, %v886
        %v969 = vmul.f32 %v293, %v887
        %v970 = vmul.f32 %v294, %v888
        %v971 = vmul.f32 %v295, %v889
        %v972 = vmul.f32 %v296, %v890
        %v973 = vmul.f32 %v297, %v891
        %v974 = vadd.f32 %v966, %v968
        %v975 = vadd.f32 %v974, %v970
        %v976 = vsel %vm268, %v972, 0.0
        %v977 = vadd.f32 %v975, %v976
        %v978 = vrot.slane %v977, 4
        %v979 = vadd.f32 %v977, %v978
        %v980 = vrot.slane %v979, 2
        %v981 = vadd.f32 %v979, %v980
        %v982 = vrot.slane %v981, 1
        %v983 = vadd.f32 %v981, %v982
        %v984 = vadd.f32 %v967, %v969
        %v985 = vadd.f32 %v984, %v971
        %v986 = vsel %vm268, %v973, 0.0
        %v987 = vadd.f32 %v985, %v986
        %v988 = vrot.slane %v987, 4
        %v989 = vadd.f32 %v987, %v988
        %v990 = vrot.slane %v989, 2
        %v991 = vadd.f32 %v989, %v990
        %v992 = vrot.slane %v991, 1
        %v993 = vadd.f32 %v991, %v992
        %v994 = vmul.f32 %v666, %v983
        %v995 = vmul.f32 %v667, %v993
        %v996 = vmul.f32 %v666, %v920
        %v997 = vmul.f32 %v667, %v921
        %v998 = vadd.f32 %v996, 1e-06
        %v999 = vadd.f32 %v997, 1e-06
        %v1000 = vrcp.pop %v998
        %v1001 = vrcp.pop %v999
        %v1002 = vmul.f32 %v998, %v1000
        %v1003 = vmul.f32 %v999, %v1001
        %v1004 = vsub.f32 2.0, %v1002
        %v1005 = vsub.f32 2.0, %v1003
        %v1006 = vmul.f32 %v1000, %v1004
        %v1007 = vmul.f32 %v1001, %v1005
        %v1008 = vmul.f32 %v994, %v1006
        %v1009 = vmul.f32 %v995, %v1007
        %v1010 = vmul.f32 %v321, %v884
        %v1011 = vmul.f32 %v322, %v885
        %v1012 = vmul.f32 %v323, %v886
        %v1013 = vmul.f32 %v324, %v887
        %v1014 = vmul.f32 %v325, %v888
        %v1015 = vmul.f32 %v326, %v889
        %v1016 = vmul.f32 %v327, %v890
        %v1017 = vmul.f32 %v328, %v891
        %v1018 = vadd.f32 %v1010, %v1012
        %v1019 = vadd.f32 %v1018, %v1014
        %v1020 = vsel %vm268, %v1016, 0.0
        %v1021 = vadd.f32 %v1019, %v1020
        %v1022 = vrot.slane %v1021, 4
        %v1023 = vadd.f32 %v1021, %v1022
        %v1024 = vrot.slane %v1023, 2
        %v1025 = vadd.f32 %v1023, %v1024
        %v1026 = vrot.slane %v1025, 1
        %v1027 = vadd.f32 %v1025, %v1026
        %v1028 = vadd.f32 %v1011, %v1013
        %v1029 = vadd.f32 %v1028, %v1015
        %v1030 = vsel %vm268, %v1017, 0.0
        %v1031 = vadd.f32 %v1029, %v1030
        %v1032 = vrot.slane %v1031, 4
        %v1033 = vadd.f32 %v1031, %v1032
        %v1034 = vrot.slane %v1033, 2
        %v1035 = vadd.f32 %v1033, %v1034
        %v1036 = vrot.slane %v1035, 1
        %v1037 = vadd.f32 %v1035, %v1036
        %v1038 = vmul.f32 %v710, %v1027
        %v1039 = vmul.f32 %v711, %v1037
        %v1040 = vmul.f32 %v710, %v920
        %v1041 = vmul.f32 %v711, %v921
        %v1042 = vadd.f32 %v1040, 1e-06
        %v1043 = vadd.f32 %v1041, 1e-06
        %v1044 = vrcp.pop %v1042
        %v1045 = vrcp.pop %v1043
        %v1046 = vmul.f32 %v1042, %v1044
        %v1047 = vmul.f32 %v1043, %v1045
        %v1048 = vsub.f32 2.0, %v1046
        %v1049 = vsub.f32 2.0, %v1047
        %v1050 = vmul.f32 %v1044, %v1048
        %v1051 = vmul.f32 %v1045, %v1049
        %v1052 = vmul.f32 %v1038, %v1050
        %v1053 = vmul.f32 %v1039, %v1051
        %v1054 = vmul.f32 %v352, %v884
        %v1055 = vmul.f32 %v353, %v885
        %v1056 = vmul.f32 %v354, %v886
        %v1057 = vmul.f32 %v355, %v887
        %v1058 = vmul.f32 %v356, %v888
        %v1059 = vmul.f32 %v357, %v889
        %v1060 = vmul.f32 %v358, %v890
        %v1061 = vmul.f32 %v359, %v891
        %v1062 = vadd.f32 %v1054, %v1056
        %v1063 = vadd.f32 %v1062, %v1058
        %v1064 = vsel %vm268, %v1060, 0.0
        %v1065 = vadd.f32 %v1063, %v1064
        %v1066 = vrot.slane %v1065, 4
        %v1067 = vadd.f32 %v1065, %v1066
        %v1068 = vrot.slane %v1067, 2
        %v1069 = vadd.f32 %v1067, %v1068
        %v1070 = vrot.slane %v1069, 1
        %v1071 = vadd.f32 %v1069, %v1070
        %v1072 = vadd.f32 %v1055, %v1057
        %v1073 = vadd.f32 %v1072, %v1059
        %v1074 = vsel %vm268, %v1061, 0.0
        %v1075 = vadd.f32 %v1073, %v1074
        %v1076 = vrot.slane %v1075, 4
        %v1077 = vadd.f32 %v1075, %v1076
        %v1078 = vrot.slane %v1077, 2
        %v1079 = vadd.f32 %v1077, %v1078
        %v1080 = vrot.slane %v1079, 1
        %v1081 = vadd.f32 %v1079, %v1080
        %v1082 = vmul.f32 %v754, %v1071
        %v1083 = vmul.f32 %v755, %v1081
        %v1084 = vmul.f32 %v754, %v920
        %v1085 = vmul.f32 %v755, %v921
        %v1086 = vadd.f32 %v1084, 1e-06
        %v1087 = vadd.f32 %v1085, 1e-06
        %v1088 = vrcp.pop %v1086
        %v1089 = vrcp.pop %v1087
        %v1090 = vmul.f32 %v1086, %v1088
        %v1091 = vmul.f32 %v1087, %v1089
        %v1092 = vsub.f32 2.0, %v1090
        %v1093 = vsub.f32 2.0, %v1091
        %v1094 = vmul.f32 %v1088, %v1092
        %v1095 = vmul.f32 %v1089, %v1093
        %v1096 = vmul.f32 %v1082, %v1094
        %v1097 = vmul.f32 %v1083, %v1095
        %v1098 = vmul.f32 %v964, %v258
        %v1099 = vmul.f32 %v965, %v259
        %v1100 = vmul.f32 %v964, %v260
        %v1101 = vmul.f32 %v965, %v261
        %v1102 = vmul.f32 %v964, %v262
        %v1103 = vmul.f32 %v965, %v263
        %v1104 = vmul.f32 %v964, %v264
        %v1105 = vmul.f32 %v965, %v265
        %v1106 = vmul.f32 %v964, %v964
        %v1107 = vmul.f32 %v965, %v965
        %v1108 = vmul.f32 %v1008, %v290
        %v1109 = vmul.f32 %v1009, %v291
        %v1110 = vmul.f32 %v1008, %v292
        %v1111 = vmul.f32 %v1009, %v293
        %v1112 = vmul.f32 %v1008, %v294
        %v1113 = vmul.f32 %v1009, %v295
        %v1114 = vmul.f32 %v1008, %v296
        %v1115 = vmul.f32 %v1009, %v297
        %v1116 = vadd.f32 %v1098, %v1108
        %v1117 = vadd.f32 %v1099, %v1109
        %v1118 = vadd.f32 %v1100, %v1110
        %v1119 = vadd.f32 %v1101, %v1111
        %v1120 = vadd.f32 %v1102, %v1112
        %v1121 = vadd.f32 %v1103, %v1113
        %v1122 = vadd.f32 %v1104, %v1114
        %v1123 = vadd.f32 %v1105, %v1115
        %v1124 = vmul.f32 %v1008, %v1008
        %v1125 = vmul.f32 %v1009, %v1009
        %v1126 = vadd.f32 %v1106, %v1124
        %v1127 = vadd.f32 %v1107, %v1125
        %v1128 = vmul.f32 %v1052, %v321
        %v1129 = vmul.f32 %v1053, %v322
        %v1130 = vmul.f32 %v1052, %v323
        %v1131 = vmul.f32 %v1053, %v324
        %v1132 = vmul.f32 %v1052, %v325
        %v1133 = vmul.f32 %v1053, %v326
        %v1134 = vmul.f32 %v1052, %v327
        %v1135 = vmul.f32 %v1053, %v328
        %v1136 = vadd.f32 %v1116, %v1128
        %v1137 = vadd.f32 %v1117, %v1129
        %v1138 = vadd.f32 %v1118, %v1130
        %v1139 = vadd.f32 %v1119, %v1131
        %v1140 = vadd.f32 %v1120, %v1132
        %v1141 = vadd.f32 %v1121, %v1133
        %v1142 = vadd.f32 %v1122, %v1134
        %v1143 = vadd.f32 %v1123, %v1135
        %v1144 = vmul.f32 %v1052, %v1052
        %v1145 = vmul.f32 %v1053, %v1053
        %v1146 = vadd.f32 %v1126, %v1144
        %v1147 = vadd.f32 %v1127, %v1145
        %v1148 = vmul.f32 %v1096, %v352
        %v1149 = vmul.f32 %v1097, %v353
        %v1150 = vmul.f32 %v1096, %v354
        %v1151 = vmul.f32 %v1097, %v355
        %v1152 = vmul.f32 %v1096, %v356
        %v1153 = vmul.f32 %v1097, %v357
        %v1154 = vmul.f32 %v1096, %v358
        %v1155 = vmul.f32 %v1097, %v359
        %v1156 = vadd.f32 %v1136, %v1148
        %v1157 = vadd.f32 %v1137, %v1149
        %v1158 = vadd.f32 %v1138, %v1150
        %v1159 = vadd.f32 %v1139, %v1151
        %v1160 = vadd.f32 %v1140, %v1152
        %v1161 = vadd.f32 %v1141, %v1153
        %v1162 = vadd.f32 %v1142, %v1154
        %v1163 = vadd.f32 %v1143, %v1155
        %v1164 = vmul.f32 %v1096, %v1096
        %v1165 = vmul.f32 %v1097, %v1097
        %v1166 = vadd.f32 %v1146, %v1164
        %v1167 = vadd.f32 %v1147, %v1165
        %v1168 = vmul.f32 %v884, %v1156
        %v1169 = vmul.f32 %v885, %v1157
        %v1170 = vmul.f32 %v886, %v1158
        %v1171 = vmul.f32 %v887, %v1159
        %v1172 = vmul.f32 %v888, %v1160
        %v1173 = vmul.f32 %v889, %v1161
        %v1174 = vmul.f32 %v890, %v1162
        %v1175 = vmul.f32 %v891, %v1163
        %v1176 = vmul.f32 %v1166, 3.0
        %v1177 = vmul.f32 %v1167, 3.0
        %v1178 = vmul.f32 %v1176, %v884
        %v1179 = vmul.f32 %v1177, %v885
        %v1180 = vmul.f32 %v1176, %v886
        %v1181 = vmul.f32 %v1177, %v887
        %v1182 = vmul.f32 %v1176, %v888
        %v1183 = vmul.f32 %v1177, %v889
        %v1184 = vmul.f32 %v1176, %v890
        %v1185 = vmul.f32 %v1177, %v891
        %v1186 = vadd.f32 %v1178, 1e-06
        %v1187 = vadd.f32 %v1179, 1e-06
        %v1188 = vadd.f32 %v1180, 1e-06
        %v1189 = vadd.f32 %v1181, 1e-06
        %v1190 = vadd.f32 %v1182, 1e-06
        %v1191 = vadd.f32 %v1183, 1e-06
        %v1192 = vadd.f32 %v1184, 1e-06
        %v1193 = vadd.f32 %v1185, 1e-06
        %v1194 = vrcp.pop %v1186
        %v1195 = vrcp.pop %v1187
        %v1196 = vrcp.pop %v1188
        %v1197 = vrcp.pop %v1189
        %v1198 = vrcp.pop %v1190
        %v1199 = vrcp.pop %v1191
        %v1200 = vrcp.pop %v1192
        %v1201 = vrcp.pop %v1193
        %v1202 = vmul.f32 %v1186, %v1194
        %v1203 = vmul.f32 %v1187, %v1195
        %v1204 = vmul.f32 %v1188, %v1196
        %v1205 = vmul.f32 %v1189, %v1197
        %v1206 = vmul.f32 %v1190, %v1198
        %v1207 = vmul.f32 %v1191, %v1199
        %v1208 = vmul.f32 %v1192, %v1200
        %v1209 = vmul.f32 %v1193, %v1201
        %v1210 = vsub.f32 2.0, %v1202
        %v1211 = vsub.f32 2.0, %v1203
        %v1212 = vsub.f32 2.0, %v1204
        %v1213 = vsub.f32 2.0, %v1205
        %v1214 = vsub.f32 2.0, %v1206
        %v1215 = vsub.f32 2.0, %v1207
        %v1216 = vsub.f32 2.0, %v1208
        %v1217 = vsub.f32 2.0, %v1209
        %v1218 = vmul.f32 %v1194, %v1210
        %v1219 = vmul.f32 %v1195, %v1211
        %v1220 = vmul.f32 %v1196, %v1212
        %v1221 = vmul.f32 %v1197, %v1213
        %v1222 = vmul.f32 %v1198, %v1214
        %v1223 = vmul.f32 %v1199, %v1215
        %v1224 = vmul.f32 %v1200, %v1216
        %v1225 = vmul.f32 %v1201, %v1217
        %v1226 = vmul.f32 %v1168, %v1218
        %v1227 = vmul.f32 %v1169, %v1219
        %v1228 = vmul.f32 %v1170, %v1220
        %v1229 = vmul.f32 %v1171, %v1221
        %v1230 = vmul.f32 %v1172, %v1222
        %v1231 = vmul.f32 %v1173, %v1223
        %v1232 = vmul.f32 %v1174, %v1224
        %v1233 = vmul.f32 %v1175, %v1225
        %v1234 = vmul.f32 %v1226, %v1226
        %v1235 = vmul.f32 %v1227, %v1227
        %v1236 = vmul.f32 %v1228, %v1228
        %v1237 = vmul.f32 %v1229, %v1229
        %v1238 = vmul.f32 %v1230, %v1230
        %v1239 = vmul.f32 %v1231, %v1231
        %v1240 = vmul.f32 %v1232, %v1232
        %v1241 = vmul.f32 %v1233, %v1233
        %v1242 = vadd.f32 %v1234, %v1236
        %v1243 = vadd.f32 %v1242, %v1238
        %v1244 = vsel %vm268, %v1240, 0.0
        %v1245 = vadd.f32 %v1243, %v1244
        %v1246 = vrot.slane %v1245, 4
        %v1247 = vadd.f32 %v1245, %v1246
        %v1248 = vrot.slane %v1247, 2
        %v1249 = vadd.f32 %v1247, %v1248
        %v1250 = vrot.slane %v1249, 1
        %v1251 = vadd.f32 %v1249, %v1250
        %v1252 = vadd.f32 %v1235, %v1237
        %v1253 = vadd.f32 %v1252, %v1239
        %v1254 = vsel %vm268, %v1241, 0.0
        %v1255 = vadd.f32 %v1253, %v1254
        %v1256 = vrot.slane %v1255, 4
        %v1257 = vadd.f32 %v1255, %v1256
        %v1258 = vrot.slane %v1257, 2
        %v1259 = vadd.f32 %v1257, %v1258
        %v1260 = vrot.slane %v1259, 1
        %v1261 = vadd.f32 %v1259, %v1260
        %v1262 = vmul.f32 %v1251, 3.0
        %v1263 = vmul.f32 %v1261, 3.0
        %v1264 = vmul.f32 %v258, %v1226
        %v1265 = vmul.f32 %v259, %v1227
        %v1266 = vmul.f32 %v260, %v1228
        %v1267 = vmul.f32 %v261, %v1229
        %v1268 = vmul.f32 %v262, %v1230
        %v1269 = vmul.f32 %v263, %v1231
        %v1270 = vmul.f32 %v264, %v1232
        %v1271 = vmul.f32 %v265, %v1233
        %v1272 = vadd.f32 %v1264, %v1266
        %v1273 = vadd.f32 %v1272, %v1268
        %v1274 = vsel %vm268, %v1270, 0.0
        %v1275 = vadd.f32 %v1273, %v1274
        %v1276 = vrot.slane %v1275, 4
        %v1277 = vadd.f32 %v1275, %v1276
        %v1278 = vrot.slane %v1277, 2
        %v1279 = vadd.f32 %v1277, %v1278
        %v1280 = vrot.slane %v1279, 1
        %v1281 = vadd.f32 %v1279, %v1280
        %v1282 = vadd.f32 %v1265, %v1267
        %v1283 = vadd.f32 %v1282, %v1269
        %v1284 = vsel %vm268, %v1271, 0.0
        %v1285 = vadd.f32 %v1283, %v1284
        %v1286 = vrot.slane %v1285, 4
        %v1287 = vadd.f32 %v1285, %v1286
        %v1288 = vrot.slane %v1287, 2
        %v1289 = vadd.f32 %v1287, %v1288
        %v1290 = vrot.slane %v1289, 1
        %v1291 = vadd.f32 %v1289, %v1290
        %v1292 = vmul.f32 %v964, %v1281
        %v1293 = vmul.f32 %v965, %v1291
        %v1294 = vmul.f32 %v964, %v1262
        %v1295 = vmul.f32 %v965, %v1263
        %v1296 = vadd.f32 %v1294, 1e-06
        %v1297 = vadd.f32 %v1295, 1e-06
        %v1298 = vrcp.pop %v1296
        %v1299 = vrcp.pop %v1297
        %v1300 = vmul.f32 %v1296, %v1298
        %v1301 = vmul.f32 %v1297, %v1299
        %v1302 = vsub.f32 2.0, %v1300
        %v1303 = vsub.f32 2.0, %v1301
        %v1304 = vmul.f32 %v1298, %v1302
        %v1305 = vmul.f32 %v1299, %v1303
        %v1306 = vmul.f32 %v1292, %v1304
        %v1307 = vmul.f32 %v1293, %v1305
        %v1308 = vmul.f32 %v290, %v1226
        %v1309 = vmul.f32 %v291, %v1227
        %v1310 = vmul.f32 %v292, %v1228
        %v1311 = vmul.f32 %v293, %v1229
        %v1312 = vmul.f32 %v294, %v1230
        %v1313 = vmul.f32 %v295, %v1231
        %v1314 = vmul.f32 %v296, %v1232
        %v1315 = vmul.f32 %v297, %v1233
        %v1316 = vadd.f32 %v1308, %v1310
        %v1317 = vadd.f32 %v1316, %v1312
        %v1318 = vsel %vm268, %v1314, 0.0
        %v1319 = vadd.f32 %v1317, %v1318
        %v1320 = vrot.slane %v1319, 4
        %v1321 = vadd.f32 %v1319, %v1320
        %v1322 = vrot.slane %v1321, 2
        %v1323 = vadd.f32 %v1321, %v1322
        %v1324 = vrot.slane %v1323, 1
        %v1325 = vadd.f32 %v1323, %v1324
        %v1326 = vadd.f32 %v1309, %v1311
        %v1327 = vadd.f32 %v1326, %v1313
        %v1328 = vsel %vm268, %v1315, 0.0
        %v1329 = vadd.f32 %v1327, %v1328
        %v1330 = vrot.slane %v1329, 4
        %v1331 = vadd.f32 %v1329, %v1330
        %v1332 = vrot.slane %v1331, 2
        %v1333 = vadd.f32 %v1331, %v1332
        %v1334 = vrot.slane %v1333, 1
        %v1335 = vadd.f32 %v1333, %v1334
        %v1336 = vmul.f32 %v1008, %v1325
        %v1337 = vmul.f32 %v1009, %v1335
        %v1338 = vmul.f32 %v1008, %v1262
        %v1339 = vmul.f32 %v1009, %v1263
        %v1340 = vadd.f32 %v1338, 1e-06
        %v1341 = vadd.f32 %v1339, 1e-06
        %v1342 = vrcp.pop %v1340
        %v1343 = vrcp.pop %v1341
        %v1344 = vmul.f32 %v1340, %v1342
        %v1345 = vmul.f32 %v1341, %v1343
        %v1346 = vsub.f32 2.0, %v1344
        %v1347 = vsub.f32 2.0, %v1345
        %v1348 = vmul.f32 %v1342, %v1346
        %v1349 = vmul.f32 %v1343, %v1347
        %v1350 = vmul.f32 %v1336, %v1348
        %v1351 = vmul.f32 %v1337, %v1349
        %v1352 = vmul.f32 %v321, %v1226
        %v1353 = vmul.f32 %v322, %v1227
        %v1354 = vmul.f32 %v323, %v1228
        %v1355 = vmul.f32 %v324, %v1229
        %v1356 = vmul.f32 %v325, %v1230
        %v1357 = vmul.f32 %v326, %v1231
        %v1358 = vmul.f32 %v327, %v1232
        %v1359 = vmul.f32 %v328, %v1233
        %v1360 = vadd.f32 %v1352, %v1354
        %v1361 = vadd.f32 %v1360, %v1356
        %v1362 = vsel %vm268, %v1358, 0.0
        %v1363 = vadd.f32 %v1361, %v1362
        %v1364 = vrot.slane %v1363, 4
        %v1365 = vadd.f32 %v1363, %v1364
        %v1366 = vrot.slane %v1365, 2
        %v1367 = vadd.f32 %v1365, %v1366
        %v1368 = vrot.slane %v1367, 1
        %v1369 = vadd.f32 %v1367, %v1368
        %v1370 = vadd.f32 %v1353, %v1355
        %v1371 = vadd.f32 %v1370, %v1357
        %v1372 = vsel %vm268, %v1359, 0.0
        %v1373 = vadd.f32 %v1371, %v1372
        %v1374 = vrot.slane %v1373, 4
        %v1375 = vadd.f32 %v1373, %v1374
        %v1376 = vrot.slane %v1375, 2
        %v1377 = vadd.f32 %v1375, %v1376
        %v1378 = vrot.slane %v1377, 1
        %v1379 = vadd.f32 %v1377, %v1378
        %v1380 = vmul.f32 %v1052, %v1369
        %v1381 = vmul.f32 %v1053, %v1379
        %v1382 = vmul.f32 %v1052, %v1262
        %v1383 = vmul.f32 %v1053, %v1263
        %v1384 = vadd.f32 %v1382, 1e-06
        %v1385 = vadd.f32 %v1383, 1e-06
        %v1386 = vrcp.pop %v1384
        %v1387 = vrcp.pop %v1385
        %v1388 = vmul.f32 %v1384, %v1386
        %v1389 = vmul.f32 %v1385, %v1387
        %v1390 = vsub.f32 2.0, %v1388
        %v1391 = vsub.f32 2.0, %v1389
        %v1392 = vmul.f32 %v1386, %v1390
        %v1393 = vmul.f32 %v1387, %v1391
        %v1394 = vmul.f32 %v1380, %v1392
        %v1395 = vmul.f32 %v1381, %v1393
        %v1396 = vmul.f32 %v352, %v1226
        %v1397 = vmul.f32 %v353, %v1227
        %v1398 = vmul.f32 %v354, %v1228
        %v1399 = vmul.f32 %v355, %v1229
        %v1400 = vmul.f32 %v356, %v1230
        %v1401 = vmul.f32 %v357, %v1231
        %v1402 = vmul.f32 %v358, %v1232
        %v1403 = vmul.f32 %v359, %v1233
        %v1404 = vadd.f32 %v1396, %v1398
        %v1405 = vadd.f32 %v1404, %v1400
        %v1406 = vsel %vm268, %v1402, 0.0
        %v1407 = vadd.f32 %v1405, %v1406
        %v1408 = vrot.slane %v1407, 4
        %v1409 = vadd.f32 %v1407, %v1408
        %v1410 = vrot.slane %v1409, 2
        %v1411 = vadd.f32 %v1409, %v1410
        %v1412 = vrot.slane %v1411, 1
        %v1413 = vadd.f32 %v1411, %v1412
        %v1414 = vadd.f32 %v1397, %v1399
        %v1415 = vadd.f32 %v1414, %v1401
        %v1416 = vsel %vm268, %v1403, 0.0
        %v1417 = vadd.f32 %v1415, %v1416
        %v1418 = vrot.slane %v1417, 4
        %v1419 = vadd.f32 %v1417, %v1418
        %v1420 = vrot.slane %v1419, 2
        %v1421 = vadd.f32 %v1419, %v1420
        %v1422 = vrot.slane %v1421, 1
        %v1423 = vadd.f32 %v1421, %v1422
        %v1424 = vmul.f32 %v1096, %v1413
        %v1425 = vmul.f32 %v1097, %v1423
        %v1426 = vmul.f32 %v1096, %v1262
        %v1427 = vmul.f32 %v1097, %v1263
        %v1428 = vadd.f32 %v1426, 1e-06
        %v1429 = vadd.f32 %v1427, 1e-06
        %v1430 = vrcp.pop %v1428
        %v1431 = vrcp.pop %v1429
        %v1432 = vmul.f32 %v1428, %v1430
        %v1433 = vmul.f32 %v1429, %v1431
        %v1434 = vsub.f32 2.0, %v1432
        %v1435 = vsub.f32 2.0, %v1433
        %v1436 = vmul.f32 %v1430, %v1434
        %v1437 = vmul.f32 %v1431, %v1435
        %v1438 = vmul.f32 %v1424, %v1436
        %v1439 = vmul.f32 %v1425, %v1437
        %v1440 = vmul.f32 %v1306, %v1228
        %v1441 = vmul.f32 %v1307, %v1229
        %v1442 = vmul.f32 %v1350, %v1228
        %v1443 = vmul.f32 %v1351, %v1229
        %v1444 = vmul.f32 %v1394, %v1228
        %v1445 = vmul.f32 %v1395, %v1229
        %v1446 = vmul.f32 %v1438, %v1228
        %v1447 = vmul.f32 %v1439, %v1229
        %s1448 = sld [smem:[#allocation3]]
        %v1449 = vstv %s1448
        %v1450 = vmul.f32 %v1449, %v1440
        %v1451 = vmul.f32 %v1449, %v1441
        %s1452 = sld [smem:[#allocation3 + $0x1]]
        %v1453 = vstv %s1452
        %v1454 = vmul.f32 %v1453, %v1442
        %v1455 = vmul.f32 %v1453, %v1443
        %v1456 = vadd.f32 %v1450, %v1454
        %v1457 = vadd.f32 %v1451, %v1455
        %s1458 = sld [smem:[#allocation3 + $0x2]]
        %v1459 = vstv %s1458
        %v1460 = vmul.f32 %v1459, %v1444
        %v1461 = vmul.f32 %v1459, %v1445
        %v1462 = vadd.f32 %v1456, %v1460
        %v1463 = vadd.f32 %v1457, %v1461
        %s1464 = sld [smem:[#allocation3 + $0x3]]
        %v1465 = vstv %s1464
        %v1466 = vmul.f32 %v1465, %v1446
        %v1467 = vmul.f32 %v1465, %v1447
        %v1468 = vadd.f32 %v1462, %v1466
        %v1469 = vadd.f32 %v1463, %v1467
        %v1470 = vmul.f32 %v1468, 3.0
        %v1471 = vmul.f32 %v1469, 3.0
        %v1472 = vmax.f32 %v1470, 0.0
        %v1473 = vmax.f32 %v1471, 0.0
        %v1476 = vcombine.high %v1472, %v1473
        %v1478 = vunpack.c.l.s4 1966171168
        %v1479 = vunpack.c.0.s8 %v1478
        %v1480 = vlaneseq
        %v1481 = vshrl.u32 %v1480, 7
        %v1482 = vsub.s32 %v1479, %v1481
        %v1483 = vrot.slane %v1476, %v1482
        %v1484 = vcombine.high %v1483, %v1483
        %v1486 = vunpack.c.l.s4 1966171168
        %v1487 = vunpack.c.0.s8 %v1486
        %v1488 = vlaneseq
        %v1489 = vshrl.u32 %v1488, 7
        %v1490 = vsub.s32 %v1487, %v1489
        %v1491 = vrot.slane %v1484, %v1490
        %v1493 = vlaneseq
        %vm1494 = vcmp.ge.s32.totalorder %v1493, 0
        %vm1495 = vcmp.lt.s32.totalorder %v1493, 256
        %vm1496 = vmand %vm1494, %vm1495
        %1497 = vst.msk [vmem:[%s255] ss:$4 sm:$0x3] %vm1496, %v1491
        %s1498 = sld [smem:[#allocation3 + $0x80]]
        %v1499 = vstv %s1498
        %v1500 = vmul.f32 %v1499, %v1440
        %v1501 = vmul.f32 %v1499, %v1441
        %s1502 = sld [smem:[#allocation3 + $0x81]]
        %v1503 = vstv %s1502
        %v1504 = vmul.f32 %v1503, %v1442
        %v1505 = vmul.f32 %v1503, %v1443
        %v1506 = vadd.f32 %v1500, %v1504
        %v1507 = vadd.f32 %v1501, %v1505
        %s1508 = sld [smem:[#allocation3 + $0x82]]
        %v1509 = vstv %s1508
        %v1510 = vmul.f32 %v1509, %v1444
        %v1511 = vmul.f32 %v1509, %v1445
        %v1512 = vadd.f32 %v1506, %v1510
        %v1513 = vadd.f32 %v1507, %v1511
        %s1514 = sld [smem:[#allocation3 + $0x83]]
        %v1515 = vstv %s1514
        %v1516 = vmul.f32 %v1515, %v1446
        %v1517 = vmul.f32 %v1515, %v1447
        %v1518 = vadd.f32 %v1512, %v1516
        %v1519 = vadd.f32 %v1513, %v1517
        %v1520 = vmul.f32 %v1518, 3.0
        %v1521 = vmul.f32 %v1519, 3.0
        %v1522 = vmax.f32 %v1520, 0.0
        %v1523 = vmax.f32 %v1521, 0.0
        %v1526 = vcombine.high %v1522, %v1523
        %v1528 = vunpack.c.l.s4 1966171168
        %v1529 = vunpack.c.0.s8 %v1528
        %v1530 = vlaneseq
        %v1531 = vshrl.u32 %v1530, 7
        %v1532 = vsub.s32 %v1529, %v1531
        %v1533 = vrot.slane %v1526, %v1532
        %v1534 = vcombine.high %v1533, %v1533
        %v1536 = vunpack.c.l.s4 1966171168
        %v1537 = vunpack.c.0.s8 %v1536
        %v1538 = vlaneseq
        %v1539 = vshrl.u32 %v1538, 7
        %v1540 = vsub.s32 %v1537, %v1539
        %v1541 = vrot.slane %v1534, %v1540
        %s1543 = scalar_lea.vmem %s255, 1 [#allocation6]
        %1544 = vst.msk [vmem:[%s1543] ss:$4 sm:$0x3] %vm1496, %v1541
        %s1545 = sld [smem:[#allocation3 + $0x100]]
        %v1546 = vstv %s1545
        %v1547 = vmul.f32 %v1546, %v1440
        %v1548 = vmul.f32 %v1546, %v1441
        %s1549 = sld [smem:[#allocation3 + $0x101]]
        %v1550 = vstv %s1549
        %v1551 = vmul.f32 %v1550, %v1442
        %v1552 = vmul.f32 %v1550, %v1443
        %v1553 = vadd.f32 %v1547, %v1551
        %v1554 = vadd.f32 %v1548, %v1552
        %s1555 = sld [smem:[#allocation3 + $0x102]]
        %v1556 = vstv %s1555
        %v1557 = vmul.f32 %v1556, %v1444
        %v1558 = vmul.f32 %v1556, %v1445
        %v1559 = vadd.f32 %v1553, %v1557
        %v1560 = vadd.f32 %v1554, %v1558
        %s1561 = sld [smem:[#allocation3 + $0x103]]
        %v1562 = vstv %s1561
        %v1563 = vmul.f32 %v1562, %v1446
        %v1564 = vmul.f32 %v1562, %v1447
        %v1565 = vadd.f32 %v1559, %v1563
        %v1566 = vadd.f32 %v1560, %v1564
        %v1567 = vmul.f32 %v1565, 3.0
        %v1568 = vmul.f32 %v1566, 3.0
        %v1569 = vmax.f32 %v1567, 0.0
        %v1570 = vmax.f32 %v1568, 0.0
        %v1573 = vcombine.high %v1569, %v1570
        %v1575 = vunpack.c.l.s4 1966171168
        %v1576 = vunpack.c.0.s8 %v1575
        %v1577 = vlaneseq
        %v1578 = vshrl.u32 %v1577, 7
        %v1579 = vsub.s32 %v1576, %v1578
        %v1580 = vrot.slane %v1573, %v1579
        %v1581 = vcombine.high %v1580, %v1580
        %v1583 = vunpack.c.l.s4 1966171168
        %v1584 = vunpack.c.0.s8 %v1583
        %v1585 = vlaneseq
        %v1586 = vshrl.u32 %v1585, 7
        %v1587 = vsub.s32 %v1584, %v1586
        %v1588 = vrot.slane %v1581, %v1587
        %s1590 = scalar_lea.vmem %s255, 2 [#allocation6]
        %1591 = vst.msk [vmem:[%s1590] ss:$4 sm:$0x3] %vm1496, %v1588
        %s1592 = sld [smem:[#allocation3 + $0x180]]
        %v1593 = vstv %s1592
        %v1594 = vmul.f32 %v1593, %v1440
        %v1595 = vmul.f32 %v1593, %v1441
        %s1596 = sld [smem:[#allocation3 + $0x181]]
        %v1597 = vstv %s1596
        %v1598 = vmul.f32 %v1597, %v1442
        %v1599 = vmul.f32 %v1597, %v1443
        %v1600 = vadd.f32 %v1594, %v1598
        %v1601 = vadd.f32 %v1595, %v1599
        %s1602 = sld [smem:[#allocation3 + $0x182]]
        %v1603 = vstv %s1602
        %v1604 = vmul.f32 %v1603, %v1444
        %v1605 = vmul.f32 %v1603, %v1445
        %v1606 = vadd.f32 %v1600, %v1604
        %v1607 = vadd.f32 %v1601, %v1605
        %s1608 = sld [smem:[#allocation3 + $0x183]]
        %v1609 = vstv %s1608
        %v1610 = vmul.f32 %v1609, %v1446
        %v1611 = vmul.f32 %v1609, %v1447
        %v1612 = vadd.f32 %v1606, %v1610
        %v1613 = vadd.f32 %v1607, %v1611
        %v1614 = vmul.f32 %v1612, 3.0
        %v1615 = vmul.f32 %v1613, 3.0
        %v1616 = vmax.f32 %v1614, 0.0
        %v1617 = vmax.f32 %v1615, 0.0
        %v1620 = vcombine.high %v1616, %v1617
        %v1622 = vunpack.c.l.s4 1966171168
        %v1623 = vunpack.c.0.s8 %v1622
        %v1624 = vlaneseq
        %v1625 = vshrl.u32 %v1624, 7
        %v1626 = vsub.s32 %v1623, %v1625
        %v1627 = vrot.slane %v1620, %v1626
        %v1628 = vcombine.high %v1627, %v1627
        %v1630 = vunpack.c.l.s4 1966171168
        %v1631 = vunpack.c.0.s8 %v1630
        %v1632 = vlaneseq
        %v1633 = vshrl.u32 %v1632, 7
        %v1634 = vsub.s32 %v1631, %v1633
        %v1635 = vrot.slane %v1628, %v1634
        %s1637 = scalar_lea.vmem %s255, 3 [#allocation6]
        %1638 = vst.msk [vmem:[%s1637] ss:$4 sm:$0x3] %vm1496, %v1635
        %s1639 = sand.u32 %s88, 1
        %s1640 = scalar_lea.sflag [#allocation4], %s1639
        %s1641 = sand.u32 %s88, 1
        %s1642 = smul.addr %s1641, 8
        %s1643 = scalar_lea.vmem [#allocation6], %s1642
        // Predicated region
        $region56: #{tpu_custom_call.1} parent=46 // pred_check
          %p1644 = pneg %p98
        $region57: #{tpu_custom_call.1} parent=46 // pred_check_branch
          %1646 = sbr.rel (%p1644) target = $region59
        $region58: #{tpu_custom_call.1} parent=46 // pred_region
          %s1647 = smul.u32 2, %s22
          %s1649 = ssub.s32 128, 128
          %1650 = vsyncadd %s1640, %s1649
          %s1651 = smul.addr %s21, 16
          %s1652 = sadd.s32 %s1647, %s1651
          %s1653 = smul.addr %s1652, 64
          %s1654 = scalar_lea.hbm %s2, %s1653
          %s1656 = sshll.u32 %s1643, 4
          %s1657 = int_to_ptr.vmem [resolvable:$true] %s1656
          %1659 = dma.vmem_to_hbm [thread:$0]  %s1657, 128, %s1654, %s1640
        $region59: #{tpu_custom_call.1} parent=46 // pred_fallthru
          _
      $region47: #{tpu_custom_call.1} parent=5 // pred_fallthru
        _
      %p1660 = scmp.le.s32.totalorder 2, %s12
      // Predicated region
      $region60: #{tpu_custom_call.1} parent=5 // pred_check
        %p1661 = pneg %p1660
      $region61: #{tpu_custom_call.1} parent=5 // pred_check_branch
        %1663 = sbr.rel (%p1661) target = $region63
      $region62: #{tpu_custom_call.1} parent=5 // pred_region
        %s1664 = ssub.s32 %s12, 2
        // Predicated region
        $region64: #{tpu_custom_call.1} parent=62 // pred_check
          %p1665 = pneg %p104
        $region65: #{tpu_custom_call.1} parent=62 // pred_check_branch
          %1667 = sbr.rel (%p1665) target = $region67
        $region66: #{tpu_custom_call.1} parent=62 // pred_region
          %s1668 = sand.u32 %s89, 1
          %s1669 = scalar_lea.sflag [#allocation4], %s1668
          %s1670 = sand.u32 %s89, 1
          %s1671 = smul.addr %s1670, 8
          %s1672 = scalar_lea.vmem [#allocation6], %s1671
          %1673 = dma.done %s1669, 128
        $region67: #{tpu_custom_call.1} parent=62 // pred_fallthru
          _
      $region63: #{tpu_custom_call.1} parent=5 // pred_fallthru
        _
    $region6: #{tpu_custom_call.1} parent=1 // loop_footer
      %s16 = sadd.s32 1, %s12
    $region7: #{tpu_custom_call.1} parent=1 // loop_footer_branch
      %11 = sbr.rel target = $region3
    $region8: #{tpu_custom_call.1} parent=1 // loop_exit
      _
    %1674 = vsyncpa [#allocation4], 1
    %s1675 = scalar_lea.sflag [#allocation4], 1
    %1676 = vsyncpa %s1675, 1
    %1677 = vsyncpa [#allocation5], 1
    %s1678 = scalar_lea.sflag [#allocation5], 1
    %1679 = vsyncpa %s1678, 1

</llo_original>
